<compile_context>
chip_gen: v7x
topology: tpu7x:2x2x1
jax: 0.10.0
libtpu: 0.0.40
codegen_flags: <defaults>
</compile_context>

<pallas_src>
import functools

import jax
import jax.numpy as jnp
from jax import lax
from jax.experimental import pallas as pl
from jax.experimental.pallas import tpu as pltpu

OBS_DIM = 8          # obs_dim (small, consistent with the module's constructor arg)
FC_HIDDEN = 128      # fc_hidden_dim (scaled down from 1024)
LSTM_HIDDEN = 128    # lstm_hidden_dim (scaled down from 512)
OUT_GROUPS, OUT_CHOICES = 20, 11     # output_dim = (20, 11)
OUT_DIM = OUT_GROUPS * OUT_CHOICES   # 220
OUT_PAD = 256                        # lane-dense padded head width
BN_EPS = 1e-5


def _round_up(n, m):
    return ((n + m - 1) // m) * m


def _pick_tile(n, candidates=(1024, 512, 256, 128, 64, 32, 16, 8)):
    for c in candidates:
        if n % c == 0:
            return c
    return n


# ---------------------------------------------------------------------------
# Kernel 1: fused input stack + LSTM recurrence (time-major, per time-block).
#   prologue: gx = relu(x @ W1_eff + b1_eff) @ W_ih + (b_ih + b_hh)   [bf16 MXU, batched]
#   serial  : per timestep, gates = gx_t + h @ W_hh ; gate order (i, f, o, g)
# ---------------------------------------------------------------------------
def lstm_fused_kernel(x_ref, h0_ref, c0_ref, w1_ref, b1_ref, wih_ref, bg_ref, whh_ref,
                      hseq_ref, hlast_ref, clast_ref,
                      h_sc, c_sc, gx_sc, *, tb, b_pad, hidden, t_real, mask_tail):
    i = pl.program_id(0)

    @pl.when(i == 0)
    def _():
        h_sc[...] = h0_ref[...]
        c_sc[...] = c0_ref[...]

    # Batched prologue for the whole (tb * b_pad) block -- off the serial path.
    feat = jnp.maximum(
        jnp.dot(x_ref[...].astype(jnp.bfloat16), w1_ref[...],
                preferred_element_type=jnp.float32) + b1_ref[...], 0.0)
    gx_sc[...] = jnp.dot(feat.astype(jnp.bfloat16), wih_ref[...],
                         preferred_element_type=jnp.float32) + bg_ref[...]

    whh = whh_ref[...]
    H = hidden
    t0 = i * tb

    def step(t, carry):
        h, c = carry
        row = pl.multiple_of(t * b_pad, b_pad)
        g = gx_sc[pl.ds(row, b_pad), :] + jnp.dot(
            h.astype(jnp.bfloat16), whh, preferred_element_type=jnp.float32)
        # sigmoid(i, f, o) as one wide tanh-form call; tanh(g) separately.
        s = 0.5 * jnp.tanh(0.5 * g[:, :3 * H]) + 0.5
        g_g = jnp.tanh(g[:, 3 * H:])
        c_new = s[:, H:2 * H] * c + s[:, :H] * g_g
        h_new = s[:, 2 * H:3 * H] * jnp.tanh(c_new)
        if mask_tail:
            valid = (t0 + t) < t_real           # freeze state on padded timesteps
            h_new = jnp.where(valid, h_new, h)
            c_new = jnp.where(valid, c_new, c)
        hseq_ref[pl.ds(row, b_pad), :] = h_new
        return h_new, c_new

    h, c = lax.fori_loop(0, tb, step, (h_sc[...], c_sc[...]), unroll=True)
    h_sc[...] = h
    c_sc[...] = c
    hlast_ref[...] = h
    clast_ref[...] = c


# ---------------------------------------------------------------------------
# Kernel 2: output head.  Linear(H, 256-padded) + grouped softmax (11-way groups).
# Block-diagonal ones matrix on the MXU broadcasts the per-group sums; exact division.
# ---------------------------------------------------------------------------
def out_head_kernel(h_ref, w_ref, b_ref, p_ref, o_ref):
    logits = jnp.dot(h_ref[...].astype(jnp.bfloat16), w_ref[...],
                     preferred_element_type=jnp.float32) + b_ref[...]    # (tr, 256)
    m = jnp.max(logits, axis=-1, keepdims=True)
    e = jnp.exp(logits - m)
    denom = jnp.dot(e, p_ref[...], preferred_element_type=jnp.float32)   # per-group sums
    o_ref[...] = e / jnp.maximum(denom, 1e-30)


# ---------------------------------------------------------------------------
# Wrapper
# ---------------------------------------------------------------------------
def actor_forward(params, x, hidden_state=None):
    B, T, D = x.shape
    F = params["w1"].shape[1]
    H = params["w_hh"].shape[0]

    B_pad = max(8, _round_up(B, 8))
    T_pad = _round_up(T, 8)
    tb = next(c for c in (32, 16, 8) if T_pad % c == 0)
    N_pad = T_pad * B_pad

    # ---- BatchNorm (training-mode batch statistics) folded into the first Linear ----
    xr = x.reshape(B * T, D).astype(jnp.float32)
    mean = jnp.mean(xr, axis=0)
    var = jnp.mean(xr * xr, axis=0) - mean * mean        # biased variance (PyTorch BN)
    scale = params["bn_gamma"] * lax.rsqrt(var + BN_EPS)
    shift = params["bn_beta"] - mean * scale
    w1_eff = (scale[:, None] * params["w1"]).astype(jnp.bfloat16)
    b1_eff = (shift[None, :] @ params["w1"] + params["b1"]).astype(jnp.float32)

    # ---- LSTM gate-column permutation (i,f,g,o) -> (i,f,o,g) + bf16 weights ----
    perm = jnp.concatenate([jnp.arange(0, 2 * H), jnp.arange(3 * H, 4 * H),
                            jnp.arange(2 * H, 3 * H)])
    w_ih = params["w_ih"][:, perm].astype(jnp.bfloat16)
    w_hh = params["w_hh"][:, perm].astype(jnp.bfloat16)
    b_g = params["b_lstm"][:, perm].astype(jnp.float32)

    # ---- time-major, padded input: (T_pad * B_pad, D) ----
    x_tm = jnp.zeros((T_pad, B_pad, D), jnp.float32).at[:T, :B].set(
        jnp.transpose(x.astype(jnp.float32), (1, 0, 2)))
    x_flat = x_tm.reshape(T_pad * B_pad, D)

    if hidden_state is None:
        h0 = jnp.zeros((B_pad, H), jnp.float32)
        c0 = jnp.zeros((B_pad, H), jnp.float32)
    else:
        h0 = jnp.zeros((B_pad, H), jnp.float32).at[:B].set(hidden_state[0].reshape(B, H))
        c0 = jnp.zeros((B_pad, H), jnp.float32).at[:B].set(hidden_state[1].reshape(B, H))

    # ---- Kernel 1: fused input stack + LSTM recurrence ----
    hseq, h_last, c_last = pl.pallas_call(
        functools.partial(lstm_fused_kernel, tb=tb, b_pad=B_pad, hidden=H,
                          t_real=T, mask_tail=(T_pad != T)),
        out_shape=(jax.ShapeDtypeStruct((N_pad, H), jnp.float32),
                   jax.ShapeDtypeStruct((B_pad, H), jnp.float32),
                   jax.ShapeDtypeStruct((B_pad, H), jnp.float32)),
        grid_spec=pltpu.PrefetchScalarGridSpec(
            num_scalar_prefetch=0,
            grid=(T_pad // tb,),
            in_specs=[
                pl.BlockSpec((tb * B_pad, D), lambda i: (i, 0)),
                pl.BlockSpec((B_pad, H), lambda i: (0, 0)),
                pl.BlockSpec((B_pad, H), lambda i: (0, 0)),
                pl.BlockSpec((D, F), lambda i: (0, 0)),
                pl.BlockSpec((1, F), lambda i: (0, 0)),
                pl.BlockSpec((F, 4 * H), lambda i: (0, 0)),
                pl.BlockSpec((1, 4 * H), lambda i: (0, 0)),
                pl.BlockSpec((H, 4 * H), lambda i: (0, 0)),
            ],
            out_specs=(pl.BlockSpec((tb * B_pad, H), lambda i: (i, 0)),
                       pl.BlockSpec((B_pad, H), lambda i: (0, 0)),
                       pl.BlockSpec((B_pad, H), lambda i: (0, 0))),
            scratch_shapes=[pltpu.VMEM((B_pad, H), jnp.float32),
                            pltpu.VMEM((B_pad, H), jnp.float32),
                            pltpu.VMEM((tb * B_pad, 4 * H), jnp.float32)],
        ),
        compiler_params=pltpu.CompilerParams(dimension_semantics=("arbitrary",)),
    )(x_flat, h0, c0, w1_eff, b1_eff, w_ih, b_g, w_hh)

    # ---- Kernel 2: output head (lane-padded to 256) ----
    group = jnp.arange(OUT_PAD, dtype=jnp.int32) // OUT_CHOICES
    p_mat = (group[:, None] == group[None, :]).astype(jnp.float32)        # (256, 256)
    w_out = jnp.zeros((H, OUT_PAD), jnp.float32).at[:, :OUT_DIM].set(
        params["w_out"]).astype(jnp.bfloat16)
    b_out = jnp.zeros((1, OUT_PAD), jnp.float32).at[:, :OUT_DIM].set(params["b_out"])

    tr = _pick_tile(N_pad)
    dist_flat = pl.pallas_call(
        out_head_kernel,
        out_shape=jax.ShapeDtypeStruct((N_pad, OUT_PAD), jnp.float32),
        grid_spec=pltpu.PrefetchScalarGridSpec(
            num_scalar_prefetch=0,
            grid=(N_pad // tr,),
            in_specs=[
                pl.BlockSpec((tr, H), lambda i: (i, 0)),
                pl.BlockSpec((H, OUT_PAD), lambda i: (0, 0)),
                pl.BlockSpec((1, OUT_PAD), lambda i: (0, 0)),
                pl.BlockSpec((OUT_PAD, OUT_PAD), lambda i: (0, 0)),
            ],
            out_specs=pl.BlockSpec((tr, OUT_PAD), lambda i: (i, 0)),
        ),
        compiler_params=pltpu.CompilerParams(dimension_semantics=("parallel",)),
    )(hseq, w_out, b_out, p_mat)

    dist = (dist_flat[:, :OUT_DIM]
            .reshape(T_pad, B_pad, OUT_GROUPS, OUT_CHOICES)
            .transpose(1, 0, 2, 3)[:B, :T])
    h_n = h_last[:B][None]                                # (1, B, H), like nn.LSTM
    c_n = c_last[:B][None]
    return dist, (h_n, c_n)


# ---------------------------------------------------------------------------
# Deterministic parameter init (weights stored pre-transposed as (in, out),
# LSTM gate columns in PyTorch order i,f,g,o -- permuted inside actor_forward).
# ---------------------------------------------------------------------------
def init_params(key, obs_dim=OBS_DIM, F=FC_HIDDEN, H=LSTM_HIDDEN):
    ks = jax.random.split(key, 8)

    def u(k, shape, bound):
        return jax.random.uniform(k, shape, jnp.float32, -bound, bound)

    return dict(
        bn_gamma=jnp.ones((obs_dim,), jnp.float32),
        bn_beta=jnp.zeros((obs_dim,), jnp.float32),
        w1=u(ks[0], (obs_dim, F), 1.0 / obs_dim ** 0.5),
        b1=u(ks[1], (1, F), 1.0 / obs_dim ** 0.5),
        w_ih=u(ks[2], (F, 4 * H), 1.0 / H ** 0.5),
        w_hh=u(ks[3], (H, 4 * H), 1.0 / H ** 0.5),
        b_lstm=u(ks[4], (1, 4 * H), 1.0 / H ** 0.5)       # b_ih + b_hh combined
               + u(ks[5], (1, 4 * H), 1.0 / H ** 0.5),
        w_out=u(ks[6], (H, OUT_DIM), 1.0 / H ** 0.5),
        b_out=u(ks[7], (1, OUT_DIM), 1.0 / H ** 0.5),
    )


if __name__ == "__main__":
    key = jax.random.PRNGKey(0)
    pkey, xkey = jax.random.split(key)
    params = init_params(pkey)

    B, T = 2, 8
    x = jax.random.normal(xkey, (B, T, OBS_DIM), dtype=jnp.float32)

    fwd = jax.jit(functools.partial(actor_forward, params))
    dist, (h_n, c_n) = fwd(x)
    jax.block_until_ready((dist, h_n, c_n))

    assert dist.shape == (B, T, OUT_GROUPS, OUT_CHOICES)
    assert h_n.shape == (1, B, LSTM_HIDDEN) and c_n.shape == (1, B, LSTM_HIDDEN)
    assert bool(jnp.all(jnp.isfinite(dist)))
    assert bool(jnp.all((dist >= 0.0) & (dist <= 1.0)))
    # grouped softmax rows sum to 1 (exact division -> tight tolerance)
    assert bool(jnp.allclose(jnp.sum(dist, axis=-1), 1.0, atol=1e-4))

    # stateful call path (hidden_state provided) also works
    dist2, (h2, c2) = fwd(x, (h_n, c_n))
    jax.block_until_ready((dist2, h2, c2))
    assert dist2.shape == (B, T, OUT_GROUPS, OUT_CHOICES)
    assert bool(jnp.allclose(jnp.sum(dist2, axis=-1), 1.0, atol=1e-4))

    print("KERNEL_OK")
</pallas_src>

<mosaic_0001>
module attributes {stable_mosaic.version = 11 : i64} {
  func.func @lstm_fused_kernel(%arg0: i32, %arg1: memref<64x8xf32, #tpu.memory_space<vmem>>, %arg2: memref<8x128xf32, #tpu.memory_space<vmem>>, %arg3: memref<8x128xf32, #tpu.memory_space<vmem>>, %arg4: memref<8x128xbf16, #tpu.memory_space<vmem>>, %arg5: memref<1x128xf32, #tpu.memory_space<vmem>>, %arg6: memref<128x512xbf16, #tpu.memory_space<vmem>>, %arg7: memref<1x512xf32, #tpu.memory_space<vmem>>, %arg8: memref<128x512xbf16, #tpu.memory_space<vmem>>, %arg9: memref<64x128xf32, #tpu.memory_space<vmem>>, %arg10: memref<8x128xf32, #tpu.memory_space<vmem>>, %arg11: memref<8x128xf32, #tpu.memory_space<vmem>>, %arg12: memref<8x128xf32, #tpu.memory_space<vmem>>, %arg13: memref<8x128xf32, #tpu.memory_space<vmem>>, %arg14: memref<64x512xf32, #tpu.memory_space<vmem>>) attributes {dimension_semantics = [#tpu.dimension_semantics<arbitrary>], iteration_bounds = array<i64: 1>, scalar_prefetch = 0 : i64, scratch_operands = 3 : i64, tpu.core_type = #tpu.core_type<tc>, window_params = [{transform_indices = @transform_0, window_bounds = array<i64: 64, 8>}, {pipeline_mode = #tpu.pipeline_mode<synchronous>, transform_indices = @transform_1, window_bounds = array<i64: 8, 128>}, {pipeline_mode = #tpu.pipeline_mode<synchronous>, transform_indices = @transform_2, window_bounds = array<i64: 8, 128>}, {pipeline_mode = #tpu.pipeline_mode<synchronous>, transform_indices = @transform_3, window_bounds = array<i64: 8, 128>}, {pipeline_mode = #tpu.pipeline_mode<synchronous>, transform_indices = @transform_4, window_bounds = array<i64: 1, 128>}, {pipeline_mode = #tpu.pipeline_mode<synchronous>, transform_indices = @transform_5, window_bounds = array<i64: 128, 512>}, {pipeline_mode = #tpu.pipeline_mode<synchronous>, transform_indices = @transform_6, window_bounds = array<i64: 1, 512>}, {pipeline_mode = #tpu.pipeline_mode<synchronous>, transform_indices = @transform_7, window_bounds = array<i64: 128, 512>}, {transform_indices = @transform_8, window_bounds = array<i64: 64, 128>}, {pipeline_mode = #tpu.pipeline_mode<synchronous>, transform_indices = @transform_9, window_bounds = array<i64: 8, 128>}, {pipeline_mode = #tpu.pipeline_mode<synchronous>, transform_indices = @transform_10, window_bounds = array<i64: 8, 128>}]} {
    %c0_i32 = arith.constant 0 : i32
    %0 = arith.cmpi eq, %arg0, %c0_i32 : i32
    %1 = arith.extui %0 : i1 to i32
    %c0_i32_0 = arith.constant 0 : i32
    %2 = arith.cmpi ne, %1, %c0_i32_0 : i32
    scf.if %2 {
      %c0_85 = arith.constant 0 : index
      %c0_86 = arith.constant 0 : index
      %242 = vector.load %arg2[%c0_85, %c0_86] : memref<8x128xf32, #tpu.memory_space<vmem>>, vector<8x128xf32>
      %c0_87 = arith.constant 0 : index
      %c0_88 = arith.constant 0 : index
      %243 = vector.load %arg12[%c0_87, %c0_88] : memref<8x128xf32, #tpu.memory_space<vmem>>, vector<8x128xf32>
      tpu.vector_store %arg12[%c0_87, %c0_88], %242 {strides = array<i32>} : memref<8x128xf32, #tpu.memory_space<vmem>>, vector<8x128xf32>,
      %c0_89 = arith.constant 0 : index
      %c0_90 = arith.constant 0 : index
      %244 = vector.load %arg3[%c0_89, %c0_90] : memref<8x128xf32, #tpu.memory_space<vmem>>, vector<8x128xf32>
      %c0_91 = arith.constant 0 : index
      %c0_92 = arith.constant 0 : index
      %245 = vector.load %arg13[%c0_91, %c0_92] : memref<8x128xf32, #tpu.memory_space<vmem>>, vector<8x128xf32>
      tpu.vector_store %arg13[%c0_91, %c0_92], %244 {strides = array<i32>} : memref<8x128xf32, #tpu.memory_space<vmem>>, vector<8x128xf32>,
    } else {
    }
    %c0 = arith.constant 0 : index
    %c0_1 = arith.constant 0 : index
    %3 = vector.load %arg1[%c0, %c0_1] : memref<64x8xf32, #tpu.memory_space<vmem>>, vector<64x8xf32>
    %4 = arith.truncf %3 : vector<64x8xf32> to vector<64x8xbf16>
    %c0_2 = arith.constant 0 : index
    %c0_3 = arith.constant 0 : index
    %5 = vector.load %arg4[%c0_2, %c0_3] : memref<8x128xbf16, #tpu.memory_space<vmem>>, vector<8x128xbf16>
    %cst = arith.constant dense<0.000000e+00> : vector<64x128xf32>
    %6 = tpu.matmul %4, %5, %cst {dimension_numbers = #tpu.dot_dimension_numbers<[1], [0], [0], [1], [0, 0, 1, 1], [], []>} : vector<64x8xbf16>, vector<8x128xbf16>, vector<64x128xf32> -> vector<64x128xf32>
    %c0_4 = arith.constant 0 : index
    %c0_5 = arith.constant 0 : index
    %7 = vector.load %arg5[%c0_4, %c0_5] : memref<1x128xf32, #tpu.memory_space<vmem>>, vector<1x128xf32>
    %8 = vector.broadcast %7 : vector<1x128xf32> to vector<64x128xf32>
    %9 = arith.addf %6, %8 : vector<64x128xf32>
    %cst_6 = arith.constant 0.000000e+00 : f32
    %10 = vector.broadcast %cst_6 : f32 to vector<64x128xf32>
    %11 = arith.maximumf %9, %10 : vector<64x128xf32>
    %12 = arith.truncf %11 : vector<64x128xf32> to vector<64x128xbf16>
    %c0_7 = arith.constant 0 : index
    %c0_8 = arith.constant 0 : index
    %13 = vector.load %arg6[%c0_7, %c0_8] : memref<128x512xbf16, #tpu.memory_space<vmem>>, vector<128x512xbf16>
    %cst_9 = arith.constant dense<0.000000e+00> : vector<64x512xf32>
    %14 = tpu.matmul %12, %13, %cst_9 {dimension_numbers = #tpu.dot_dimension_numbers<[1], [0], [0], [1], [0, 0, 1, 1], [], []>} : vector<64x128xbf16>, vector<128x512xbf16>, vector<64x512xf32> -> vector<64x512xf32>
    %c0_10 = arith.constant 0 : index
    %c0_11 = arith.constant 0 : index
    %15 = vector.load %arg7[%c0_10, %c0_11] : memref<1x512xf32, #tpu.memory_space<vmem>>, vector<1x512xf32>
    %16 = vector.broadcast %15 : vector<1x512xf32> to vector<64x512xf32>
    %17 = arith.addf %14, %16 : vector<64x512xf32>
    %c0_12 = arith.constant 0 : index
    %c0_13 = arith.constant 0 : index
    %18 = vector.load %arg14[%c0_12, %c0_13] : memref<64x512xf32, #tpu.memory_space<vmem>>, vector<64x512xf32>
    tpu.vector_store %arg14[%c0_12, %c0_13], %17 {strides = array<i32>} : memref<64x512xf32, #tpu.memory_space<vmem>>, vector<64x512xf32>,
    %c0_14 = arith.constant 0 : index
    %c0_15 = arith.constant 0 : index
    %19 = vector.load %arg8[%c0_14, %c0_15] : memref<128x512xbf16, #tpu.memory_space<vmem>>, vector<128x512xbf16>
    %c0_16 = arith.constant 0 : index
    %c0_17 = arith.constant 0 : index
    %20 = vector.load %arg12[%c0_16, %c0_17] : memref<8x128xf32, #tpu.memory_space<vmem>>, vector<8x128xf32>
    %c0_18 = arith.constant 0 : index
    %c0_19 = arith.constant 0 : index
    %21 = vector.load %arg13[%c0_18, %c0_19] : memref<8x128xf32, #tpu.memory_space<vmem>>, vector<8x128xf32>
    %c0_i32_20 = arith.constant 0 : i32
    %c8_i32 = arith.constant 8 : i32
    %22 = arith.muli %c0_i32_20, %c8_i32 : i32
    %23 = tpu.assume_multiple %22, 8 : i32
    %24 = arith.index_cast %23 : i32 to index
    %c0_21 = arith.constant 0 : index
    %25 = vector.load %arg14[%24, %c0_21] : memref<64x512xf32, #tpu.memory_space<vmem>>, vector<8x512xf32>
    %26 = arith.truncf %20 : vector<8x128xf32> to vector<8x128xbf16>
    %cst_22 = arith.constant dense<0.000000e+00> : vector<8x512xf32>
    %27 = tpu.matmul %26, %19, %cst_22 {dimension_numbers = #tpu.dot_dimension_numbers<[1], [0], [0], [1], [0, 0, 1, 1], [], []>} : vector<8x128xbf16>, vector<128x512xbf16>, vector<8x512xf32> -> vector<8x512xf32>
    %28 = arith.addf %25, %27 : vector<8x512xf32>
    %29 = vector.extract_strided_slice %28 {offsets = [0, 0], sizes = [8, 384], strides = [1, 1]} : vector<8x512xf32> to vector<8x384xf32>
    %cst_23 = arith.constant 5.000000e-01 : f32
    %30 = vector.broadcast %cst_23 : f32 to vector<8x384xf32>
    %31 = arith.mulf %30, %29 : vector<8x384xf32>
    %32 = math.tanh %31 : vector<8x384xf32>
    %cst_24 = arith.constant 5.000000e-01 : f32
    %33 = vector.broadcast %cst_24 : f32 to vector<8x384xf32>
    %34 = arith.mulf %33, %32 : vector<8x384xf32>
    %cst_25 = arith.constant 5.000000e-01 : f32
    %35 = vector.broadcast %cst_25 : f32 to vector<8x384xf32>
    %36 = arith.addf %34, %35 : vector<8x384xf32>
    %37 = vector.extract_strided_slice %28 {offsets = [0, 384], sizes = [8, 128], strides = [1, 1]} : vector<8x512xf32> to vector<8x128xf32>
    %38 = math.tanh %37 : vector<8x128xf32>
    %39 = vector.extract_strided_slice %36 {offsets = [0, 128], sizes = [8, 128], strides = [1, 1]} : vector<8x384xf32> to vector<8x128xf32>
    %40 = arith.mulf %39, %21 : vector<8x128xf32>
    %41 = vector.extract_strided_slice %36 {offsets = [0, 0], sizes = [8, 128], strides = [1, 1]} : vector<8x384xf32> to vector<8x128xf32>
    %42 = arith.mulf %41, %38 : vector<8x128xf32>
    %43 = arith.addf %40, %42 : vector<8x128xf32>
    %44 = vector.extract_strided_slice %36 {offsets = [0, 256], sizes = [8, 128], strides = [1, 1]} : vector<8x384xf32> to vector<8x128xf32>
    %45 = math.tanh %43 : vector<8x128xf32>
    %46 = arith.mulf %44, %45 : vector<8x128xf32>
    %47 = arith.index_cast %23 : i32 to index
    %c0_26 = arith.constant 0 : index
    %48 = vector.load %arg9[%47, %c0_26] : memref<64x128xf32, #tpu.memory_space<vmem>>, vector<8x128xf32>
    tpu.vector_store %arg9[%47, %c0_26], %46 {strides = array<i32>} : memref<64x128xf32, #tpu.memory_space<vmem>>, vector<8x128xf32>,
    %c1_i32 = arith.constant 1 : i32
    %c8_i32_27 = arith.constant 8 : i32
    %49 = arith.muli %c1_i32, %c8_i32_27 : i32
    %50 = tpu.assume_multiple %49, 8 : i32
    %51 = arith.index_cast %50 : i32 to index
    %c0_28 = arith.constant 0 : index
    %52 = vector.load %arg14[%51, %c0_28] : memref<64x512xf32, #tpu.memory_space<vmem>>, vector<8x512xf32>
    %53 = arith.truncf %46 : vector<8x128xf32> to vector<8x128xbf16>
    %cst_29 = arith.constant dense<0.000000e+00> : vector<8x512xf32>
    %54 = tpu.matmul %53, %19, %cst_29 {dimension_numbers = #tpu.dot_dimension_numbers<[1], [0], [0], [1], [0, 0, 1, 1], [], []>} : vector<8x128xbf16>, vector<128x512xbf16>, vector<8x512xf32> -> vector<8x512xf32>
    %55 = arith.addf %52, %54 : vector<8x512xf32>
    %56 = vector.extract_strided_slice %55 {offsets = [0, 0], sizes = [8, 384], strides = [1, 1]} : vector<8x512xf32> to vector<8x384xf32>
    %cst_30 = arith.constant 5.000000e-01 : f32
    %57 = vector.broadcast %cst_30 : f32 to vector<8x384xf32>
    %58 = arith.mulf %57, %56 : vector<8x384xf32>
    %59 = math.tanh %58 : vector<8x384xf32>
    %cst_31 = arith.constant 5.000000e-01 : f32
    %60 = vector.broadcast %cst_31 : f32 to vector<8x384xf32>
    %61 = arith.mulf %60, %59 : vector<8x384xf32>
    %cst_32 = arith.constant 5.000000e-01 : f32
    %62 = vector.broadcast %cst_32 : f32 to vector<8x384xf32>
    %63 = arith.addf %61, %62 : vector<8x384xf32>
    %64 = vector.extract_strided_slice %55 {offsets = [0, 384], sizes = [8, 128], strides = [1, 1]} : vector<8x512xf32> to vector<8x128xf32>
    %65 = math.tanh %64 : vector<8x128xf32>
    %66 = vector.extract_strided_slice %63 {offsets = [0, 128], sizes = [8, 128], strides = [1, 1]} : vector<8x384xf32> to vector<8x128xf32>
    %67 = arith.mulf %66, %43 : vector<8x128xf32>
    %68 = vector.extract_strided_slice %63 {offsets = [0, 0], sizes = [8, 128], strides = [1, 1]} : vector<8x384xf32> to vector<8x128xf32>
    %69 = arith.mulf %68, %65 : vector<8x128xf32>
    %70 = arith.addf %67, %69 : vector<8x128xf32>
    %71 = vector.extract_strided_slice %63 {offsets = [0, 256], sizes = [8, 128], strides = [1, 1]} : vector<8x384xf32> to vector<8x128xf32>
    %72 = math.tanh %70 : vector<8x128xf32>
    %73 = arith.mulf %71, %72 : vector<8x128xf32>
    %74 = arith.index_cast %50 : i32 to index
    %c0_33 = arith.constant 0 : index
    %75 = vector.load %arg9[%74, %c0_33] : memref<64x128xf32, #tpu.memory_space<vmem>>, vector<8x128xf32>
    tpu.vector_store %arg9[%74, %c0_33], %73 {strides = array<i32>} : memref<64x128xf32, #tpu.memory_space<vmem>>, vector<8x128xf32>,
    %c2_i32 = arith.constant 2 : i32
    %c8_i32_34 = arith.constant 8 : i32
    %76 = arith.muli %c2_i32, %c8_i32_34 : i32
    %77 = tpu.assume_multiple %76, 8 : i32
    %78 = arith.index_cast %77 : i32 to index
    %c0_35 = arith.constant 0 : index
    %79 = vector.load %arg14[%78, %c0_35] : memref<64x512xf32, #tpu.memory_space<vmem>>, vector<8x512xf32>
    %80 = arith.truncf %73 : vector<8x128xf32> to vector<8x128xbf16>
    %cst_36 = arith.constant dense<0.000000e+00> : vector<8x512xf32>
    %81 = tpu.matmul %80, %19, %cst_36 {dimension_numbers = #tpu.dot_dimension_numbers<[1], [0], [0], [1], [0, 0, 1, 1], [], []>} : vector<8x128xbf16>, vector<128x512xbf16>, vector<8x512xf32> -> vector<8x512xf32>
    %82 = arith.addf %79, %81 : vector<8x512xf32>
    %83 = vector.extract_strided_slice %82 {offsets = [0, 0], sizes = [8, 384], strides = [1, 1]} : vector<8x512xf32> to vector<8x384xf32>
    %cst_37 = arith.constant 5.000000e-01 : f32
    %84 = vector.broadcast %cst_37 : f32 to vector<8x384xf32>
    %85 = arith.mulf %84, %83 : vector<8x384xf32>
    %86 = math.tanh %85 : vector<8x384xf32>
    %cst_38 = arith.constant 5.000000e-01 : f32
    %87 = vector.broadcast %cst_38 : f32 to vector<8x384xf32>
    %88 = arith.mulf %87, %86 : vector<8x384xf32>
    %cst_39 = arith.constant 5.000000e-01 : f32
    %89 = vector.broadcast %cst_39 : f32 to vector<8x384xf32>
    %90 = arith.addf %88, %89 : vector<8x384xf32>
    %91 = vector.extract_strided_slice %82 {offsets = [0, 384], sizes = [8, 128], strides = [1, 1]} : vector<8x512xf32> to vector<8x128xf32>
    %92 = math.tanh %91 : vector<8x128xf32>
    %93 = vector.extract_strided_slice %90 {offsets = [0, 128], sizes = [8, 128], strides = [1, 1]} : vector<8x384xf32> to vector<8x128xf32>
    %94 = arith.mulf %93, %70 : vector<8x128xf32>
    %95 = vector.extract_strided_slice %90 {offsets = [0, 0], sizes = [8, 128], strides = [1, 1]} : vector<8x384xf32> to vector<8x128xf32>
    %96 = arith.mulf %95, %92 : vector<8x128xf32>
    %97 = arith.addf %94, %96 : vector<8x128xf32>
    %98 = vector.extract_strided_slice %90 {offsets = [0, 256], sizes = [8, 128], strides = [1, 1]} : vector<8x384xf32> to vector<8x128xf32>
    %99 = math.tanh %97 : vector<8x128xf32>
    %100 = arith.mulf %98, %99 : vector<8x128xf32>
    %101 = arith.index_cast %77 : i32 to index
    %c0_40 = arith.constant 0 : index
    %102 = vector.load %arg9[%101, %c0_40] : memref<64x128xf32, #tpu.memory_space<vmem>>, vector<8x128xf32>
    tpu.vector_store %arg9[%101, %c0_40], %100 {strides = array<i32>} : memref<64x128xf32, #tpu.memory_space<vmem>>, vector<8x128xf32>,
    %c3_i32 = arith.constant 3 : i32
    %c8_i32_41 = arith.constant 8 : i32
    %103 = arith.muli %c3_i32, %c8_i32_41 : i32
    %104 = tpu.assume_multiple %103, 8 : i32
    %105 = arith.index_cast %104 : i32 to index
    %c0_42 = arith.constant 0 : index
    %106 = vector.load %arg14[%105, %c0_42] : memref<64x512xf32, #tpu.memory_space<vmem>>, vector<8x512xf32>
    %107 = arith.truncf %100 : vector<8x128xf32> to vector<8x128xbf16>
    %cst_43 = arith.constant dense<0.000000e+00> : vector<8x512xf32>
    %108 = tpu.matmul %107, %19, %cst_43 {dimension_numbers = #tpu.dot_dimension_numbers<[1], [0], [0], [1], [0, 0, 1, 1], [], []>} : vector<8x128xbf16>, vector<128x512xbf16>, vector<8x512xf32> -> vector<8x512xf32>
    %109 = arith.addf %106, %108 : vector<8x512xf32>
    %110 = vector.extract_strided_slice %109 {offsets = [0, 0], sizes = [8, 384], strides = [1, 1]} : vector<8x512xf32> to vector<8x384xf32>
    %cst_44 = arith.constant 5.000000e-01 : f32
    %111 = vector.broadcast %cst_44 : f32 to vector<8x384xf32>
    %112 = arith.mulf %111, %110 : vector<8x384xf32>
    %113 = math.tanh %112 : vector<8x384xf32>
    %cst_45 = arith.constant 5.000000e-01 : f32
    %114 = vector.broadcast %cst_45 : f32 to vector<8x384xf32>
    %115 = arith.mulf %114, %113 : vector<8x384xf32>
    %cst_46 = arith.constant 5.000000e-01 : f32
    %116 = vector.broadcast %cst_46 : f32 to vector<8x384xf32>
    %117 = arith.addf %115, %116 : vector<8x384xf32>
    %118 = vector.extract_strided_slice %109 {offsets = [0, 384], sizes = [8, 128], strides = [1, 1]} : vector<8x512xf32> to vector<8x128xf32>
    %119 = math.tanh %118 : vector<8x128xf32>
    %120 = vector.extract_strided_slice %117 {offsets = [0, 128], sizes = [8, 128], strides = [1, 1]} : vector<8x384xf32> to vector<8x128xf32>
    %121 = arith.mulf %120, %97 : vector<8x128xf32>
    %122 = vector.extract_strided_slice %117 {offsets = [0, 0], sizes = [8, 128], strides = [1, 1]} : vector<8x384xf32> to vector<8x128xf32>
    %123 = arith.mulf %122, %119 : vector<8x128xf32>
    %124 = arith.addf %121, %123 : vector<8x128xf32>
    %125 = vector.extract_strided_slice %117 {offsets = [0, 256], sizes = [8, 128], strides = [1, 1]} : vector<8x384xf32> to vector<8x128xf32>
    %126 = math.tanh %124 : vector<8x128xf32>
    %127 = arith.mulf %125, %126 : vector<8x128xf32>
    %128 = arith.index_cast %104 : i32 to index
    %c0_47 = arith.constant 0 : index
    %129 = vector.load %arg9[%128, %c0_47] : memref<64x128xf32, #tpu.memory_space<vmem>>, vector<8x128xf32>
    tpu.vector_store %arg9[%128, %c0_47], %127 {strides = array<i32>} : memref<64x128xf32, #tpu.memory_space<vmem>>, vector<8x128xf32>,
    %c4_i32 = arith.constant 4 : i32
    %c8_i32_48 = arith.constant 8 : i32
    %130 = arith.muli %c4_i32, %c8_i32_48 : i32
    %131 = tpu.assume_multiple %130, 8 : i32
    %132 = arith.index_cast %131 : i32 to index
    %c0_49 = arith.constant 0 : index
    %133 = vector.load %arg14[%132, %c0_49] : memref<64x512xf32, #tpu.memory_space<vmem>>, vector<8x512xf32>
    %134 = arith.truncf %127 : vector<8x128xf32> to vector<8x128xbf16>
    %cst_50 = arith.constant dense<0.000000e+00> : vector<8x512xf32>
    %135 = tpu.matmul %134, %19, %cst_50 {dimension_numbers = #tpu.dot_dimension_numbers<[1], [0], [0], [1], [0, 0, 1, 1], [], []>} : vector<8x128xbf16>, vector<128x512xbf16>, vector<8x512xf32> -> vector<8x512xf32>
    %136 = arith.addf %133, %135 : vector<8x512xf32>
    %137 = vector.extract_strided_slice %136 {offsets = [0, 0], sizes = [8, 384], strides = [1, 1]} : vector<8x512xf32> to vector<8x384xf32>
    %cst_51 = arith.constant 5.000000e-01 : f32
    %138 = vector.broadcast %cst_51 : f32 to vector<8x384xf32>
    %139 = arith.mulf %138, %137 : vector<8x384xf32>
    %140 = math.tanh %139 : vector<8x384xf32>
    %cst_52 = arith.constant 5.000000e-01 : f32
    %141 = vector.broadcast %cst_52 : f32 to vector<8x384xf32>
    %142 = arith.mulf %141, %140 : vector<8x384xf32>
    %cst_53 = arith.constant 5.000000e-01 : f32
    %143 = vector.broadcast %cst_53 : f32 to vector<8x384xf32>
    %144 = arith.addf %142, %143 : vector<8x384xf32>
    %145 = vector.extract_strided_slice %136 {offsets = [0, 384], sizes = [8, 128], strides = [1, 1]} : vector<8x512xf32> to vector<8x128xf32>
    %146 = math.tanh %145 : vector<8x128xf32>
    %147 = vector.extract_strided_slice %144 {offsets = [0, 128], sizes = [8, 128], strides = [1, 1]} : vector<8x384xf32> to vector<8x128xf32>
    %148 = arith.mulf %147, %124 : vector<8x128xf32>
    %149 = vector.extract_strided_slice %144 {offsets = [0, 0], sizes = [8, 128], strides = [1, 1]} : vector<8x384xf32> to vector<8x128xf32>
    %150 = arith.mulf %149, %146 : vector<8x128xf32>
    %151 = arith.addf %148, %150 : vector<8x128xf32>
    %152 = vector.extract_strided_slice %144 {offsets = [0, 256], sizes = [8, 128], strides = [1, 1]} : vector<8x384xf32> to vector<8x128xf32>
    %153 = math.tanh %151 : vector<8x128xf32>
    %154 = arith.mulf %152, %153 : vector<8x128xf32>
    %155 = arith.index_cast %131 : i32 to index
    %c0_54 = arith.constant 0 : index
    %156 = vector.load %arg9[%155, %c0_54] : memref<64x128xf32, #tpu.memory_space<vmem>>, vector<8x128xf32>
    tpu.vector_store %arg9[%155, %c0_54], %154 {strides = array<i32>} : memref<64x128xf32, #tpu.memory_space<vmem>>, vector<8x128xf32>,
    %c5_i32 = arith.constant 5 : i32
    %c8_i32_55 = arith.constant 8 : i32
    %157 = arith.muli %c5_i32, %c8_i32_55 : i32
    %158 = tpu.assume_multiple %157, 8 : i32
    %159 = arith.index_cast %158 : i32 to index
    %c0_56 = arith.constant 0 : index
    %160 = vector.load %arg14[%159, %c0_56] : memref<64x512xf32, #tpu.memory_space<vmem>>, vector<8x512xf32>
    %161 = arith.truncf %154 : vector<8x128xf32> to vector<8x128xbf16>
    %cst_57 = arith.constant dense<0.000000e+00> : vector<8x512xf32>
    %162 = tpu.matmul %161, %19, %cst_57 {dimension_numbers = #tpu.dot_dimension_numbers<[1], [0], [0], [1], [0, 0, 1, 1], [], []>} : vector<8x128xbf16>, vector<128x512xbf16>, vector<8x512xf32> -> vector<8x512xf32>
    %163 = arith.addf %160, %162 : vector<8x512xf32>
    %164 = vector.extract_strided_slice %163 {offsets = [0, 0], sizes = [8, 384], strides = [1, 1]} : vector<8x512xf32> to vector<8x384xf32>
    %cst_58 = arith.constant 5.000000e-01 : f32
    %165 = vector.broadcast %cst_58 : f32 to vector<8x384xf32>
    %166 = arith.mulf %165, %164 : vector<8x384xf32>
    %167 = math.tanh %166 : vector<8x384xf32>
    %cst_59 = arith.constant 5.000000e-01 : f32
    %168 = vector.broadcast %cst_59 : f32 to vector<8x384xf32>
    %169 = arith.mulf %168, %167 : vector<8x384xf32>
    %cst_60 = arith.constant 5.000000e-01 : f32
    %170 = vector.broadcast %cst_60 : f32 to vector<8x384xf32>
    %171 = arith.addf %169, %170 : vector<8x384xf32>
    %172 = vector.extract_strided_slice %163 {offsets = [0, 384], sizes = [8, 128], strides = [1, 1]} : vector<8x512xf32> to vector<8x128xf32>
    %173 = math.tanh %172 : vector<8x128xf32>
    %174 = vector.extract_strided_slice %171 {offsets = [0, 128], sizes = [8, 128], strides = [1, 1]} : vector<8x384xf32> to vector<8x128xf32>
    %175 = arith.mulf %174, %151 : vector<8x128xf32>
    %176 = vector.extract_strided_slice %171 {offsets = [0, 0], sizes = [8, 128], strides = [1, 1]} : vector<8x384xf32> to vector<8x128xf32>
    %177 = arith.mulf %176, %173 : vector<8x128xf32>
    %178 = arith.addf %175, %177 : vector<8x128xf32>
    %179 = vector.extract_strided_slice %171 {offsets = [0, 256], sizes = [8, 128], strides = [1, 1]} : vector<8x384xf32> to vector<8x128xf32>
    %180 = math.tanh %178 : vector<8x128xf32>
    %181 = arith.mulf %179, %180 : vector<8x128xf32>
    %182 = arith.index_cast %158 : i32 to index
    %c0_61 = arith.constant 0 : index
    %183 = vector.load %arg9[%182, %c0_61] : memref<64x128xf32, #tpu.memory_space<vmem>>, vector<8x128xf32>
    tpu.vector_store %arg9[%182, %c0_61], %181 {strides = array<i32>} : memref<64x128xf32, #tpu.memory_space<vmem>>, vector<8x128xf32>,
    %c6_i32 = arith.constant 6 : i32
    %c8_i32_62 = arith.constant 8 : i32
    %184 = arith.muli %c6_i32, %c8_i32_62 : i32
    %185 = tpu.assume_multiple %184, 8 : i32
    %186 = arith.index_cast %185 : i32 to index
    %c0_63 = arith.constant 0 : index
    %187 = vector.load %arg14[%186, %c0_63] : memref<64x512xf32, #tpu.memory_space<vmem>>, vector<8x512xf32>
    %188 = arith.truncf %181 : vector<8x128xf32> to vector<8x128xbf16>
    %cst_64 = arith.constant dense<0.000000e+00> : vector<8x512xf32>
    %189 = tpu.matmul %188, %19, %cst_64 {dimension_numbers = #tpu.dot_dimension_numbers<[1], [0], [0], [1], [0, 0, 1, 1], [], []>} : vector<8x128xbf16>, vector<128x512xbf16>, vector<8x512xf32> -> vector<8x512xf32>
    %190 = arith.addf %187, %189 : vector<8x512xf32>
    %191 = vector.extract_strided_slice %190 {offsets = [0, 0], sizes = [8, 384], strides = [1, 1]} : vector<8x512xf32> to vector<8x384xf32>
    %cst_65 = arith.constant 5.000000e-01 : f32
    %192 = vector.broadcast %cst_65 : f32 to vector<8x384xf32>
    %193 = arith.mulf %192, %191 : vector<8x384xf32>
    %194 = math.tanh %193 : vector<8x384xf32>
    %cst_66 = arith.constant 5.000000e-01 : f32
    %195 = vector.broadcast %cst_66 : f32 to vector<8x384xf32>
    %196 = arith.mulf %195, %194 : vector<8x384xf32>
    %cst_67 = arith.constant 5.000000e-01 : f32
    %197 = vector.broadcast %cst_67 : f32 to vector<8x384xf32>
    %198 = arith.addf %196, %197 : vector<8x384xf32>
    %199 = vector.extract_strided_slice %190 {offsets = [0, 384], sizes = [8, 128], strides = [1, 1]} : vector<8x512xf32> to vector<8x128xf32>
    %200 = math.tanh %199 : vector<8x128xf32>
    %201 = vector.extract_strided_slice %198 {offsets = [0, 128], sizes = [8, 128], strides = [1, 1]} : vector<8x384xf32> to vector<8x128xf32>
    %202 = arith.mulf %201, %178 : vector<8x128xf32>
    %203 = vector.extract_strided_slice %198 {offsets = [0, 0], sizes = [8, 128], strides = [1, 1]} : vector<8x384xf32> to vector<8x128xf32>
    %204 = arith.mulf %203, %200 : vector<8x128xf32>
    %205 = arith.addf %202, %204 : vector<8x128xf32>
    %206 = vector.extract_strided_slice %198 {offsets = [0, 256], sizes = [8, 128], strides = [1, 1]} : vector<8x384xf32> to vector<8x128xf32>
    %207 = math.tanh %205 : vector<8x128xf32>
    %208 = arith.mulf %206, %207 : vector<8x128xf32>
    %209 = arith.index_cast %185 : i32 to index
    %c0_68 = arith.constant 0 : index
    %210 = vector.load %arg9[%209, %c0_68] : memref<64x128xf32, #tpu.memory_space<vmem>>, vector<8x128xf32>
    tpu.vector_store %arg9[%209, %c0_68], %208 {strides = array<i32>} : memref<64x128xf32, #tpu.memory_space<vmem>>, vector<8x128xf32>,
    %c7_i32 = arith.constant 7 : i32
    %c8_i32_69 = arith.constant 8 : i32
    %211 = arith.muli %c7_i32, %c8_i32_69 : i32
    %212 = tpu.assume_multiple %211, 8 : i32
    %213 = arith.index_cast %212 : i32 to index
    %c0_70 = arith.constant 0 : index
    %214 = vector.load %arg14[%213, %c0_70] : memref<64x512xf32, #tpu.memory_space<vmem>>, vector<8x512xf32>
    %215 = arith.truncf %208 : vector<8x128xf32> to vector<8x128xbf16>
    %cst_71 = arith.constant dense<0.000000e+00> : vector<8x512xf32>
    %216 = tpu.matmul %215, %19, %cst_71 {dimension_numbers = #tpu.dot_dimension_numbers<[1], [0], [0], [1], [0, 0, 1, 1], [], []>} : vector<8x128xbf16>, vector<128x512xbf16>, vector<8x512xf32> -> vector<8x512xf32>
    %217 = arith.addf %214, %216 : vector<8x512xf32>
    %218 = vector.extract_strided_slice %217 {offsets = [0, 0], sizes = [8, 384], strides = [1, 1]} : vector<8x512xf32> to vector<8x384xf32>
    %cst_72 = arith.constant 5.000000e-01 : f32
    %219 = vector.broadcast %cst_72 : f32 to vector<8x384xf32>
    %220 = arith.mulf %219, %218 : vector<8x384xf32>
    %221 = math.tanh %220 : vector<8x384xf32>
    %cst_73 = arith.constant 5.000000e-01 : f32
    %222 = vector.broadcast %cst_73 : f32 to vector<8x384xf32>
    %223 = arith.mulf %222, %221 : vector<8x384xf32>
    %cst_74 = arith.constant 5.000000e-01 : f32
    %224 = vector.broadcast %cst_74 : f32 to vector<8x384xf32>
    %225 = arith.addf %223, %224 : vector<8x384xf32>
    %226 = vector.extract_strided_slice %217 {offsets = [0, 384], sizes = [8, 128], strides = [1, 1]} : vector<8x512xf32> to vector<8x128xf32>
    %227 = math.tanh %226 : vector<8x128xf32>
    %228 = vector.extract_strided_slice %225 {offsets = [0, 128], sizes = [8, 128], strides = [1, 1]} : vector<8x384xf32> to vector<8x128xf32>
    %229 = arith.mulf %228, %205 : vector<8x128xf32>
    %230 = vector.extract_strided_slice %225 {offsets = [0, 0], sizes = [8, 128], strides = [1, 1]} : vector<8x384xf32> to vector<8x128xf32>
    %231 = arith.mulf %230, %227 : vector<8x128xf32>
    %232 = arith.addf %229, %231 : vector<8x128xf32>
    %233 = vector.extract_strided_slice %225 {offsets = [0, 256], sizes = [8, 128], strides = [1, 1]} : vector<8x384xf32> to vector<8x128xf32>
    %234 = math.tanh %232 : vector<8x128xf32>
    %235 = arith.mulf %233, %234 : vector<8x128xf32>
    %236 = arith.index_cast %212 : i32 to index
    %c0_75 = arith.constant 0 : index
    %237 = vector.load %arg9[%236, %c0_75] : memref<64x128xf32, #tpu.memory_space<vmem>>, vector<8x128xf32>
    tpu.vector_store %arg9[%236, %c0_75], %235 {strides = array<i32>} : memref<64x128xf32, #tpu.memory_space<vmem>>, vector<8x128xf32>,
    %c8_i32_76 = arith.constant 8 : i32
    %c0_77 = arith.constant 0 : index
    %c0_78 = arith.constant 0 : index
    %238 = vector.load %arg12[%c0_77, %c0_78] : memref<8x128xf32, #tpu.memory_space<vmem>>, vector<8x128xf32>
    tpu.vector_store %arg12[%c0_77, %c0_78], %235 {strides = array<i32>} : memref<8x128xf32, #tpu.memory_space<vmem>>, vector<8x128xf32>,
    %c0_79 = arith.constant 0 : index
    %c0_80 = arith.constant 0 : index
    %239 = vector.load %arg13[%c0_79, %c0_80] : memref<8x128xf32, #tpu.memory_space<vmem>>, vector<8x128xf32>
    tpu.vector_store %arg13[%c0_79, %c0_80], %232 {strides = array<i32>} : memref<8x128xf32, #tpu.memory_space<vmem>>, vector<8x128xf32>,
    %c0_81 = arith.constant 0 : index
    %c0_82 = arith.constant 0 : index
    %240 = vector.load %arg10[%c0_81, %c0_82] : memref<8x128xf32, #tpu.memory_space<vmem>>, vector<8x128xf32>
    tpu.vector_store %arg10[%c0_81, %c0_82], %235 {strides = array<i32>} : memref<8x128xf32, #tpu.memory_space<vmem>>, vector<8x128xf32>,
    %c0_83 = arith.constant 0 : index
    %c0_84 = arith.constant 0 : index
    %241 = vector.load %arg11[%c0_83, %c0_84] : memref<8x128xf32, #tpu.memory_space<vmem>>, vector<8x128xf32>
    tpu.vector_store %arg11[%c0_83, %c0_84], %232 {strides = array<i32>} : memref<8x128xf32, #tpu.memory_space<vmem>>, vector<8x128xf32>,
    return
  }
  func.func @transform_0(%arg0: i32) -> (i32, i32) {
    %c0_i32 = arith.constant 0 : i32
    %c0_i32_0 = arith.constant 0 : i32
    return %arg0, %c0_i32 : i32, i32
  }
  func.func @transform_1(%arg0: i32) -> (i32, i32) {
    %c0_i32 = arith.constant 0 : i32
    %c0_i32_0 = arith.constant 0 : i32
    %c0_i32_1 = arith.constant 0 : i32
    return %c0_i32, %c0_i32_0 : i32, i32
  }
  func.func @transform_2(%arg0: i32) -> (i32, i32) {
    %c0_i32 = arith.constant 0 : i32
    %c0_i32_0 = arith.constant 0 : i32
    %c0_i32_1 = arith.constant 0 : i32
    return %c0_i32, %c0_i32_0 : i32, i32
  }
  func.func @transform_3(%arg0: i32) -> (i32, i32) {
    %c0_i32 = arith.constant 0 : i32
    %c0_i32_0 = arith.constant 0 : i32
    %c0_i32_1 = arith.constant 0 : i32
    return %c0_i32, %c0_i32_0 : i32, i32
  }
  func.func @transform_4(%arg0: i32) -> (i32, i32) {
    %c0_i32 = arith.constant 0 : i32
    %c0_i32_0 = arith.constant 0 : i32
    %c0_i32_1 = arith.constant 0 : i32
    return %c0_i32, %c0_i32_0 : i32, i32
  }
  func.func @transform_5(%arg0: i32) -> (i32, i32) {
    %c0_i32 = arith.constant 0 : i32
    %c0_i32_0 = arith.constant 0 : i32
    %c0_i32_1 = arith.constant 0 : i32
    return %c0_i32, %c0_i32_0 : i32, i32
  }
  func.func @transform_6(%arg0: i32) -> (i32, i32) {
    %c0_i32 = arith.constant 0 : i32
    %c0_i32_0 = arith.constant 0 : i32
    %c0_i32_1 = arith.constant 0 : i32
    return %c0_i32, %c0_i32_0 : i32, i32
  }
  func.func @transform_7(%arg0: i32) -> (i32, i32) {
    %c0_i32 = arith.constant 0 : i32
    %c0_i32_0 = arith.constant 0 : i32
    %c0_i32_1 = arith.constant 0 : i32
    return %c0_i32, %c0_i32_0 : i32, i32
  }
  func.func @transform_8(%arg0: i32) -> (i32, i32) {
    %c0_i32 = arith.constant 0 : i32
    %c0_i32_0 = arith.constant 0 : i32
    return %arg0, %c0_i32 : i32, i32
  }
  func.func @transform_9(%arg0: i32) -> (i32, i32) {
    %c0_i32 = arith.constant 0 : i32
    %c0_i32_0 = arith.constant 0 : i32
    %c0_i32_1 = arith.constant 0 : i32
    return %c0_i32, %c0_i32_0 : i32, i32
  }
  func.func @transform_10(%arg0: i32) -> (i32, i32) {
    %c0_i32 = arith.constant 0 : i32
    %c0_i32_0 = arith.constant 0 : i32
    %c0_i32_1 = arith.constant 0 : i32
    return %c0_i32, %c0_i32_0 : i32, i32
  }
}

module attributes {stable_mosaic.version = 11 : i64} {
  func.func @out_head_kernel(%arg0: i32, %arg1: memref<64x128xf32, #tpu.memory_space<vmem>>, %arg2: memref<128x256xbf16, #tpu.memory_space<vmem>>, %arg3: memref<1x256xf32, #tpu.memory_space<vmem>>, %arg4: memref<256x256xf32, #tpu.memory_space<vmem>>, %arg5: memref<64x256xf32, #tpu.memory_space<vmem>>) attributes {dimension_semantics = [#tpu.dimension_semantics<parallel>], iteration_bounds = array<i64: 1>, scalar_prefetch = 0 : i64, scratch_operands = 0 : i64, tpu.core_type = #tpu.core_type<tc>, window_params = [{transform_indices = @transform_0, window_bounds = array<i64: 64, 128>}, {pipeline_mode = #tpu.pipeline_mode<synchronous>, transform_indices = @transform_1, window_bounds = array<i64: 128, 256>}, {pipeline_mode = #tpu.pipeline_mode<synchronous>, transform_indices = @transform_2, window_bounds = array<i64: 1, 256>}, {pipeline_mode = #tpu.pipeline_mode<synchronous>, transform_indices = @transform_3, window_bounds = array<i64: 256, 256>}, {transform_indices = @transform_4, window_bounds = array<i64: 64, 256>}]} {
    %c0 = arith.constant 0 : index
    %c0_0 = arith.constant 0 : index
    %0 = vector.load %arg1[%c0, %c0_0] : memref<64x128xf32, #tpu.memory_space<vmem>>, vector<64x128xf32>
    %1 = arith.truncf %0 : vector<64x128xf32> to vector<64x128xbf16>
    %c0_1 = arith.constant 0 : index
    %c0_2 = arith.constant 0 : index
    %2 = vector.load %arg2[%c0_1, %c0_2] : memref<128x256xbf16, #tpu.memory_space<vmem>>, vector<128x256xbf16>
    %cst = arith.constant dense<0.000000e+00> : vector<64x256xf32>
    %3 = tpu.matmul %1, %2, %cst {dimension_numbers = #tpu.dot_dimension_numbers<[1], [0], [0], [1], [0, 0, 1, 1], [], []>} : vector<64x128xbf16>, vector<128x256xbf16>, vector<64x256xf32> -> vector<64x256xf32>
    %c0_3 = arith.constant 0 : index
    %c0_4 = arith.constant 0 : index
    %4 = vector.load %arg3[%c0_3, %c0_4] : memref<1x256xf32, #tpu.memory_space<vmem>>, vector<1x256xf32>
    %5 = vector.broadcast %4 : vector<1x256xf32> to vector<64x256xf32>
    %6 = arith.addf %3, %5 : vector<64x256xf32>
    %cst_5 = arith.constant dense<0xFF800000> : vector<64xf32>
    %7 = vector.multi_reduction <maximumf>, %6, %cst_5 [1] : vector<64x256xf32> to vector<64xf32>
    %8 = vector.shape_cast %7 : vector<64xf32> to vector<64x1xf32>
    %9 = vector.broadcast %8 : vector<64x1xf32> to vector<64x256xf32>
    %10 = arith.subf %6, %9 : vector<64x256xf32>
    %11 = math.exp %10 : vector<64x256xf32>
    %c0_6 = arith.constant 0 : index
    %c0_7 = arith.constant 0 : index
    %12 = vector.load %arg4[%c0_6, %c0_7] : memref<256x256xf32, #tpu.memory_space<vmem>>, vector<256x256xf32>
    %cst_8 = arith.constant dense<0.000000e+00> : vector<64x256xf32>
    %13 = tpu.matmul %11, %12, %cst_8 {dimension_numbers = #tpu.dot_dimension_numbers<[1], [0], [0], [1], [0, 0, 1, 1], [], []>} : vector<64x256xf32>, vector<256x256xf32>, vector<64x256xf32> -> vector<64x256xf32>
    %cst_9 = arith.constant 1.000000e-30 : f32
    %14 = vector.broadcast %cst_9 : f32 to vector<64x256xf32>
    %15 = arith.maximumf %13, %14 : vector<64x256xf32>
    %16 = arith.divf %11, %15 : vector<64x256xf32>
    %c0_10 = arith.constant 0 : index
    %c0_11 = arith.constant 0 : index
    %17 = vector.load %arg5[%c0_10, %c0_11] : memref<64x256xf32, #tpu.memory_space<vmem>>, vector<64x256xf32>
    tpu.vector_store %arg5[%c0_10, %c0_11], %16 {strides = array<i32>} : memref<64x256xf32, #tpu.memory_space<vmem>>, vector<64x256xf32>,
    return
  }
  func.func @transform_0(%arg0: i32) -> (i32, i32) {
    %c0_i32 = arith.constant 0 : i32
    %c0_i32_0 = arith.constant 0 : i32
    return %arg0, %c0_i32 : i32, i32
  }
  func.func @transform_1(%arg0: i32) -> (i32, i32) {
    %c0_i32 = arith.constant 0 : i32
    %c0_i32_0 = arith.constant 0 : i32
    %c0_i32_1 = arith.constant 0 : i32
    return %c0_i32, %c0_i32_0 : i32, i32
  }
  func.func @transform_2(%arg0: i32) -> (i32, i32) {
    %c0_i32 = arith.constant 0 : i32
    %c0_i32_0 = arith.constant 0 : i32
    %c0_i32_1 = arith.constant 0 : i32
    return %c0_i32, %c0_i32_0 : i32, i32
  }
  func.func @transform_3(%arg0: i32) -> (i32, i32) {
    %c0_i32 = arith.constant 0 : i32
    %c0_i32_0 = arith.constant 0 : i32
    %c0_i32_1 = arith.constant 0 : i32
    return %c0_i32, %c0_i32_0 : i32, i32
  }
  func.func @transform_4(%arg0: i32) -> (i32, i32) {
    %c0_i32 = arith.constant 0 : i32
    %c0_i32_0 = arith.constant 0 : i32
    return %arg0, %c0_i32 : i32, i32
  }
}

</mosaic_0001>

<llo_original>
// kernel: actor_forward.3
$region0: #{actor_forward.3}
  #allocation0 [shape = 'u32[]', space=smem, size = 0x4, offset = 0x4, fixed_abs, tag = 'smem constant byte address 0x4 - core index']
  #allocation1 [shape = 'u32[144,128]{1,0:T(1,128)}', space=vmem, size = 0x12000, scoped, tag = 'internal scratch']
  %s0 = inlined_call_operand.vmem [shape: f32[64,128], index: 0, kind: input, shape index: {}]
  %s1 = inlined_call_operand.vmem [shape: bf16[128,256], index: 1, kind: input, shape index: {}]
  %s2 = inlined_call_operand.vmem [shape: f32[1,256], index: 2, kind: input, shape index: {}]
  %s3 = inlined_call_operand.vmem [shape: f32[256,256], index: 3, kind: input, shape index: {}]
  %s4 = inlined_call_operand.vmem [shape: f32[64,256], index: 4, kind: output, shape index: {}]
  %s5 = sld [smem:[#allocation0]]
  $region26: #{actor_forward.3} parent=0
    _
  %s7 = ssub.s32 1, %s5
  %s8 = scalar_select 0, %s7, %s5
  // Predicated region
  $region2: #{actor_forward.3} parent=0 // pred_check
    _
  $region3: #{actor_forward.3} parent=0 // pred_check_branch
    %10 = sbr.rel (0) target = $region5
  $region4: #{actor_forward.3} parent=0 // pred_region
    _
  $region5: #{actor_forward.3} parent=0 // pred_fallthru
    _
  // Predicated region
  $region6: #{actor_forward.3} parent=0 // pred_check
    _
  $region7: #{actor_forward.3} parent=0 // pred_check_branch
    %12 = sbr.rel (0) target = $region9
  $region8: #{actor_forward.3} parent=0 // pred_region
    _
  $region9: #{actor_forward.3} parent=0 // pred_fallthru
    _
  // Predicated region
  $region10: #{actor_forward.3} parent=0 // pred_check
    _
  $region11: #{actor_forward.3} parent=0 // pred_check_branch
    %14 = sbr.rel (0) target = $region13
  $region12: #{actor_forward.3} parent=0 // pred_region
    _
  $region13: #{actor_forward.3} parent=0 // pred_fallthru
    _
  // Predicated region
  $region14: #{actor_forward.3} parent=0 // pred_check
    _
  $region15: #{actor_forward.3} parent=0 // pred_check_branch
    %16 = sbr.rel (0) target = $region17
  $region16: #{actor_forward.3} parent=0 // pred_region
    _
  $region17: #{actor_forward.3} parent=0 // pred_fallthru
    _
  %v18 = vld [vmem:[%s0] sm:$0xff]
  %v19 = vld [vmem:[%s0 + $0x8] sm:$0xff]
  %v20 = vld [vmem:[%s0 + $0x10] sm:$0xff]
  %v21 = vld [vmem:[%s0 + $0x18] sm:$0xff]
  %v22 = vld [vmem:[%s0 + $0x20] sm:$0xff]
  %v23 = vld [vmem:[%s0 + $0x28] sm:$0xff]
  %v24 = vld [vmem:[%s0 + $0x30] sm:$0xff]
  %v25 = vld [vmem:[%s0 + $0x38] sm:$0xff]
  %v26 = vpack.c.bf16 %v19, %v18
  %v27 = vpack.c.bf16 %v21, %v20
  %v28 = vpack.c.bf16 %v23, %v22
  %v29 = vpack.c.bf16 %v25, %v24
  %v30 = vld [vmem:[%s1] sm:$0xff]
  %v31 = vld [vmem:[%s1 + $0x8] sm:$0xff]
  %v32 = vld [vmem:[%s1 + $0x10] sm:$0xff]
  %v33 = vld [vmem:[%s1 + $0x18] sm:$0xff]
  %v34 = vld [vmem:[%s1 + $0x20] sm:$0xff]
  %v35 = vld [vmem:[%s1 + $0x28] sm:$0xff]
  %v36 = vld [vmem:[%s1 + $0x30] sm:$0xff]
  %v37 = vld [vmem:[%s1 + $0x38] sm:$0xff]
  %v38 = vld [vmem:[%s1 + $0x40] sm:$0xff]
  %v39 = vld [vmem:[%s1 + $0x48] sm:$0xff]
  %v40 = vld [vmem:[%s1 + $0x50] sm:$0xff]
  %v41 = vld [vmem:[%s1 + $0x58] sm:$0xff]
  %v42 = vld [vmem:[%s1 + $0x60] sm:$0xff]
  %v43 = vld [vmem:[%s1 + $0x68] sm:$0xff]
  %v44 = vld [vmem:[%s1 + $0x70] sm:$0xff]
  %v45 = vld [vmem:[%s1 + $0x78] sm:$0xff]
  %v46 = vld [vmem:[%s2] sm:$0x3]
  %v48 = vlaneseq
  %v49 = vshrl.u32 %v48, 7
  %v50 = vsub.s32 0, %v49
  %v51 = vrot.slane %v46, %v50
  %v52 = vlaneseq
  %v53 = vshrl.u32 %v52, 7
  %v54 = vsub.s32 1, %v53
  %v55 = vrot.slane %v46, %v54
  %v74 = vunpack.c.l.b16 %v30
  %v75 = vunpack.c.h.b16 %v30
  %v76 = vunpack.c.l.b16 %v31
  %v77 = vunpack.c.h.b16 %v31
  %v78 = vunpack.c.l.b16 %v32
  %v79 = vunpack.c.h.b16 %v32
  %v80 = vunpack.c.l.b16 %v33
  %v81 = vunpack.c.h.b16 %v33
  %v82 = vunpack.c.l.b16 %v34
  %v83 = vunpack.c.h.b16 %v34
  %v84 = vunpack.c.l.b16 %v35
  %v85 = vunpack.c.h.b16 %v35
  %v86 = vunpack.c.l.b16 %v36
  %v87 = vunpack.c.h.b16 %v36
  %v88 = vunpack.c.l.b16 %v37
  %v89 = vunpack.c.h.b16 %v37
  %v90 = vunpack.c.l.b16 %v38
  %v91 = vunpack.c.h.b16 %v38
  %v92 = vunpack.c.l.b16 %v39
  %v93 = vunpack.c.h.b16 %v39
  %v94 = vunpack.c.l.b16 %v40
  %v95 = vunpack.c.h.b16 %v40
  %v96 = vunpack.c.l.b16 %v41
  %v97 = vunpack.c.h.b16 %v41
  %v98 = vunpack.c.l.b16 %v42
  %v99 = vunpack.c.h.b16 %v42
  %v100 = vunpack.c.l.b16 %v43
  %v101 = vunpack.c.h.b16 %v43
  %v102 = vunpack.c.l.b16 %v44
  %v103 = vunpack.c.h.b16 %v44
  %v104 = vunpack.c.l.b16 %v45
  %v105 = vunpack.c.h.b16 %v45
  %v106 = vpack.c.b16 %v76, %v74
  %v107 = vpack.c.b16 %v77, %v75
  %v108 = vpack.c.b16 %v80, %v78
  %v109 = vpack.c.b16 %v81, %v79
  %v110 = vpack.c.b16 %v84, %v82
  %v111 = vpack.c.b16 %v85, %v83
  %v112 = vpack.c.b16 %v88, %v86
  %v113 = vpack.c.b16 %v89, %v87
  %v114 = vpack.c.b16 %v92, %v90
  %v115 = vpack.c.b16 %v93, %v91
  %v116 = vpack.c.b16 %v96, %v94
  %v117 = vpack.c.b16 %v97, %v95
  %v118 = vpack.c.b16 %v100, %v98
  %v119 = vpack.c.b16 %v101, %v99
  %v120 = vpack.c.b16 %v104, %v102
  %v121 = vpack.c.b16 %v105, %v103
  %138 = vmatprep.subr.bf16.mxu0 %v107
  %139 = vmatpush1.bf16.msra.mxu0 %v106
  %140 = vmatprep.subr.bf16.mxu0 %v109
  %141 = vmatpush1.bf16.msra.mxu0 %v108
  %142 = vmatprep.subr.bf16.mxu0 %v111
  %143 = vmatpush1.bf16.msra.mxu0 %v110
  %144 = vmatprep.subr.bf16.mxu0 %v113
  %145 = vmatpush1.bf16.msra.mxu0 %v112
  %146 = vmatprep.subr.bf16.mxu0 %v115
  %147 = vmatpush1.bf16.msra.mxu0 %v114
  %148 = vmatprep.subr.bf16.mxu0 %v117
  %149 = vmatpush1.bf16.msra.mxu0 %v116
  %150 = vmatprep.subr.bf16.mxu0 %v119
  %151 = vmatpush1.bf16.msra.mxu0 %v118
  %152 = vmatprep.subr.bf16.mxu0 %v121
  %153 = vmatpush1.bf16.msra.mxu0 %v120
  %154 = vmatprep.subr.bf16.mxu0 0
  %155 = vmatpush1.bf16.msra.mxu0 0
  %156 = vmatprep.subr.bf16.mxu0 0
  %157 = vmatpush1.bf16.msra.mxu0 0
  %158 = vmatprep.subr.bf16.mxu0 0
  %159 = vmatpush1.bf16.msra.mxu0 0
  %160 = vmatprep.subr.bf16.mxu0 0
  %161 = vmatpush1.bf16.msra.mxu0 0
  %162 = vmatprep.subr.bf16.mxu0 0
  %163 = vmatpush1.bf16.msra.mxu0 0
  %164 = vmatprep.subr.bf16.mxu0 0
  %165 = vmatpush1.bf16.msra.mxu0 0
  %166 = vmatprep.subr.bf16.mxu0 0
  %167 = vmatpush1.bf16.msra.mxu0 0
  %168 = vmatprep.subr.bf16.mxu0 0
  %169 = vmatpush1.bf16.msra.mxu0 0
  %170 = vmatprep.mubr.bf16.mxu0 0
  %171 = vmatmul.mubr.bf16.gmra.mrb[0].mxu0 %v26
  %v172 = vpop.f32.mrb[0].mxu0
  %v173 = vadd.f32 %v51, %v172
  %v174 = vpop.f32.mrb[0].mxu0
  %v175 = vadd.f32 %v55, %v174
  %v176 = vpop.f32.mrb[0].mxu0
  %v177 = vadd.f32 %v51, %v176
  %v178 = vpop.f32.mrb[0].mxu0
  %v179 = vadd.f32 %v55, %v178
  %180 = vmatprep.mubr.bf16.mxu0 0
  %181 = vmatmul.mubr.bf16.gmra.mrb[0].mxu0 %v27
  %v182 = vpop.f32.mrb[0].mxu0
  %v183 = vadd.f32 %v51, %v182
  %v184 = vpop.f32.mrb[0].mxu0
  %v185 = vadd.f32 %v55, %v184
  %v186 = vpop.f32.mrb[0].mxu0
  %v187 = vadd.f32 %v51, %v186
  %v188 = vpop.f32.mrb[0].mxu0
  %v189 = vadd.f32 %v55, %v188
  %190 = vmatprep.mubr.bf16.mxu0 0
  %191 = vmatmul.mubr.bf16.gmra.mrb[0].mxu0 %v28
  %v192 = vpop.f32.mrb[0].mxu0
  %v193 = vadd.f32 %v51, %v192
  %v194 = vpop.f32.mrb[0].mxu0
  %v195 = vadd.f32 %v55, %v194
  %v196 = vpop.f32.mrb[0].mxu0
  %v197 = vadd.f32 %v51, %v196
  %v198 = vpop.f32.mrb[0].mxu0
  %v199 = vadd.f32 %v55, %v198
  %200 = vmatprep.mubr.bf16.mxu0 0
  %201 = vmatmul.mubr.bf16.gmra.mrb[0].mxu0 %v29
  %v202 = vpop.f32.mrb[0].mxu0
  %v203 = vadd.f32 %v51, %v202
  %v204 = vpop.f32.mrb[0].mxu0
  %v205 = vadd.f32 %v55, %v204
  %v206 = vpop.f32.mrb[0].mxu0
  %v207 = vadd.f32 %v51, %v206
  %v208 = vpop.f32.mrb[0].mxu0
  %v209 = vadd.f32 %v55, %v208
  %210 = vdwg.mxu0
  %v211 = vmax.f32 %v173, %v175
  %212 = vmax.xlane.f32.xlu0 %v211
  %v213 = vpop.xlane.xlu0 %212
  %v214 = vmax.f32 %v177, %v179
  %215 = vmax.xlane.f32.xlu0 %v214
  %v216 = vpop.xlane.xlu0 %215
  %v217 = vmax.f32 %v183, %v185
  %218 = vmax.xlane.f32.xlu0 %v217
  %v219 = vpop.xlane.xlu0 %218
  %v220 = vmax.f32 %v187, %v189
  %221 = vmax.xlane.f32.xlu0 %v220
  %v222 = vpop.xlane.xlu0 %221
  %v223 = vmax.f32 %v193, %v195
  %224 = vmax.xlane.f32.xlu0 %v223
  %v225 = vpop.xlane.xlu0 %224
  %v226 = vmax.f32 %v197, %v199
  %227 = vmax.xlane.f32.xlu0 %v226
  %v228 = vpop.xlane.xlu0 %227
  %v229 = vmax.f32 %v203, %v205
  %230 = vmax.xlane.f32.xlu0 %v229
  %v231 = vpop.xlane.xlu0 %230
  %v232 = vmax.f32 %v207, %v209
  %233 = vmax.xlane.f32.xlu0 %v232
  %v234 = vpop.xlane.xlu0 %233
  %v235 = vsub.f32 %v173, %v213
  %v236 = vsub.f32 %v175, %v213
  %v237 = vsub.f32 %v177, %v216
  %v238 = vsub.f32 %v179, %v216
  %v239 = vsub.f32 %v183, %v219
  %v240 = vsub.f32 %v185, %v219
  %v241 = vsub.f32 %v187, %v222
  %v242 = vsub.f32 %v189, %v222
  %v243 = vsub.f32 %v193, %v225
  %v244 = vsub.f32 %v195, %v225
  %v245 = vsub.f32 %v197, %v228
  %v246 = vsub.f32 %v199, %v228
  %v247 = vsub.f32 %v203, %v231
  %v248 = vsub.f32 %v205, %v231
  %v249 = vsub.f32 %v207, %v234
  %v250 = vsub.f32 %v209, %v234
  %v251 = vmul.f32 %v235, 1.442695
  %v252 = vpow.pop %v251
  %v253 = vmul.f32 %v236, 1.442695
  %v254 = vpow.pop %v253
  %v255 = vmul.f32 %v237, 1.442695
  %v256 = vpow.pop %v255
  %v257 = vmul.f32 %v238, 1.442695
  %v258 = vpow.pop %v257
  %v259 = vmul.f32 %v239, 1.442695
  %v260 = vpow.pop %v259
  %v261 = vmul.f32 %v240, 1.442695
  %v262 = vpow.pop %v261
  %v263 = vmul.f32 %v241, 1.442695
  %v264 = vpow.pop %v263
  %v265 = vmul.f32 %v242, 1.442695
  %v266 = vpow.pop %v265
  %v267 = vmul.f32 %v243, 1.442695
  %v268 = vpow.pop %v267
  %v269 = vmul.f32 %v244, 1.442695
  %v270 = vpow.pop %v269
  %v271 = vmul.f32 %v245, 1.442695
  %v272 = vpow.pop %v271
  %v273 = vmul.f32 %v246, 1.442695
  %v274 = vpow.pop %v273
  %v275 = vmul.f32 %v247, 1.442695
  %v276 = vpow.pop %v275
  %v277 = vmul.f32 %v248, 1.442695
  %v278 = vpow.pop %v277
  %v279 = vmul.f32 %v249, 1.442695
  %v280 = vpow.pop %v279
  %v281 = vmul.f32 %v250, 1.442695
  %v282 = vpow.pop %v281
  %v283 = vld [vmem:[%s3] sm:$0xff]
  %v284 = vld [vmem:[%s3 + $0x8] sm:$0xff]
  %v285 = vld [vmem:[%s3 + $0x10] sm:$0xff]
  %v286 = vld [vmem:[%s3 + $0x18] sm:$0xff]
  %v287 = vld [vmem:[%s3 + $0x20] sm:$0xff]
  %v288 = vld [vmem:[%s3 + $0x28] sm:$0xff]
  %v289 = vld [vmem:[%s3 + $0x30] sm:$0xff]
  %v290 = vld [vmem:[%s3 + $0x38] sm:$0xff]
  %v291 = vld [vmem:[%s3 + $0x40] sm:$0xff]
  %v292 = vld [vmem:[%s3 + $0x48] sm:$0xff]
  %v293 = vld [vmem:[%s3 + $0x50] sm:$0xff]
  %v294 = vld [vmem:[%s3 + $0x58] sm:$0xff]
  %v295 = vld [vmem:[%s3 + $0x60] sm:$0xff]
  %v296 = vld [vmem:[%s3 + $0x68] sm:$0xff]
  %v297 = vld [vmem:[%s3 + $0x70] sm:$0xff]
  %v298 = vld [vmem:[%s3 + $0x78] sm:$0xff]
  %v299 = vld [vmem:[%s3 + $0x80] sm:$0xff]
  %v300 = vld [vmem:[%s3 + $0x88] sm:$0xff]
  %v301 = vld [vmem:[%s3 + $0x90] sm:$0xff]
  %v302 = vld [vmem:[%s3 + $0x98] sm:$0xff]
  %v303 = vld [vmem:[%s3 + $0xa0] sm:$0xff]
  %v304 = vld [vmem:[%s3 + $0xa8] sm:$0xff]
  %v305 = vld [vmem:[%s3 + $0xb0] sm:$0xff]
  %v306 = vld [vmem:[%s3 + $0xb8] sm:$0xff]
  %v307 = vld [vmem:[%s3 + $0xc0] sm:$0xff]
  %v308 = vld [vmem:[%s3 + $0xc8] sm:$0xff]
  %v309 = vld [vmem:[%s3 + $0xd0] sm:$0xff]
  %v310 = vld [vmem:[%s3 + $0xd8] sm:$0xff]
  %v311 = vld [vmem:[%s3 + $0xe0] sm:$0xff]
  %v312 = vld [vmem:[%s3 + $0xe8] sm:$0xff]
  %v313 = vld [vmem:[%s3 + $0xf0] sm:$0xff]
  %v314 = vld [vmem:[%s3 + $0xf8] sm:$0xff]
  %v315 = vld [vmem:[%s3 + $0x100] sm:$0xff]
  %v316 = vld [vmem:[%s3 + $0x108] sm:$0xff]
  %v317 = vld [vmem:[%s3 + $0x110] sm:$0xff]
  %v318 = vld [vmem:[%s3 + $0x118] sm:$0xff]
  %v319 = vld [vmem:[%s3 + $0x120] sm:$0xff]
  %v320 = vld [vmem:[%s3 + $0x128] sm:$0xff]
  %v321 = vld [vmem:[%s3 + $0x130] sm:$0xff]
  %v322 = vld [vmem:[%s3 + $0x138] sm:$0xff]
  %v323 = vld [vmem:[%s3 + $0x140] sm:$0xff]
  %v324 = vld [vmem:[%s3 + $0x148] sm:$0xff]
  %v325 = vld [vmem:[%s3 + $0x150] sm:$0xff]
  %v326 = vld [vmem:[%s3 + $0x158] sm:$0xff]
  %v327 = vld [vmem:[%s3 + $0x160] sm:$0xff]
  %v328 = vld [vmem:[%s3 + $0x168] sm:$0xff]
  %v329 = vld [vmem:[%s3 + $0x170] sm:$0xff]
  %v330 = vld [vmem:[%s3 + $0x178] sm:$0xff]
  %v331 = vld [vmem:[%s3 + $0x180] sm:$0xff]
  %v332 = vld [vmem:[%s3 + $0x188] sm:$0xff]
  %v333 = vld [vmem:[%s3 + $0x190] sm:$0xff]
  %v334 = vld [vmem:[%s3 + $0x198] sm:$0xff]
  %v335 = vld [vmem:[%s3 + $0x1a0] sm:$0xff]
  %v336 = vld [vmem:[%s3 + $0x1a8] sm:$0xff]
  %v337 = vld [vmem:[%s3 + $0x1b0] sm:$0xff]
  %v338 = vld [vmem:[%s3 + $0x1b8] sm:$0xff]
  %v339 = vld [vmem:[%s3 + $0x1c0] sm:$0xff]
  %v340 = vld [vmem:[%s3 + $0x1c8] sm:$0xff]
  %v341 = vld [vmem:[%s3 + $0x1d0] sm:$0xff]
  %v342 = vld [vmem:[%s3 + $0x1d8] sm:$0xff]
  %v343 = vld [vmem:[%s3 + $0x1e0] sm:$0xff]
  %v344 = vld [vmem:[%s3 + $0x1e8] sm:$0xff]
  %v345 = vld [vmem:[%s3 + $0x1f0] sm:$0xff]
  %v346 = vld [vmem:[%s3 + $0x1f8] sm:$0xff]
  %347 = vmatprep.subr.mxu0 %v284
  %348 = vmatpush1.msra.mxu0 %v283
  %349 = vmatprep.subr.mxu0 %v286
  %350 = vmatpush1.msra.mxu0 %v285
  %351 = vmatprep.subr.mxu0 %v288
  %352 = vmatpush1.msra.mxu0 %v287
  %353 = vmatprep.subr.mxu0 %v290
  %354 = vmatpush1.msra.mxu0 %v289
  %355 = vmatprep.subr.mxu0 %v292
  %356 = vmatpush1.msra.mxu0 %v291
  %357 = vmatprep.subr.mxu0 %v294
  %358 = vmatpush1.msra.mxu0 %v293
  %359 = vmatprep.subr.mxu0 %v296
  %360 = vmatpush1.msra.mxu0 %v295
  %361 = vmatprep.subr.mxu0 %v298
  %362 = vmatpush1.msra.mxu0 %v297
  %363 = vmatprep.subr.mxu0 %v300
  %364 = vmatpush1.msra.mxu0 %v299
  %365 = vmatprep.subr.mxu0 %v302
  %366 = vmatpush1.msra.mxu0 %v301
  %367 = vmatprep.subr.mxu0 %v304
  %368 = vmatpush1.msra.mxu0 %v303
  %369 = vmatprep.subr.mxu0 %v306
  %370 = vmatpush1.msra.mxu0 %v305
  %371 = vmatprep.subr.mxu0 %v308
  %372 = vmatpush1.msra.mxu0 %v307
  %373 = vmatprep.subr.mxu0 %v310
  %374 = vmatpush1.msra.mxu0 %v309
  %375 = vmatprep.subr.mxu0 %v312
  %376 = vmatpush1.msra.mxu0 %v311
  %377 = vmatprep.subr.mxu0 %v314
  %378 = vmatpush1.msra.mxu0 %v313
  %379 = vmatprep.subr.mxu0 %v316
  %380 = vmatpush1.msra.mxu0 %v315
  %381 = vmatprep.subr.mxu0 %v318
  %382 = vmatpush1.msra.mxu0 %v317
  %383 = vmatprep.subr.mxu0 %v320
  %384 = vmatpush1.msra.mxu0 %v319
  %385 = vmatprep.subr.mxu0 %v322
  %386 = vmatpush1.msra.mxu0 %v321
  %387 = vmatprep.subr.mxu0 %v324
  %388 = vmatpush1.msra.mxu0 %v323
  %389 = vmatprep.subr.mxu0 %v326
  %390 = vmatpush1.msra.mxu0 %v325
  %391 = vmatprep.subr.mxu0 %v328
  %392 = vmatpush1.msra.mxu0 %v327
  %393 = vmatprep.subr.mxu0 %v330
  %394 = vmatpush1.msra.mxu0 %v329
  %395 = vmatprep.subr.mxu0 %v332
  %396 = vmatpush1.msra.mxu0 %v331
  %397 = vmatprep.subr.mxu0 %v334
  %398 = vmatpush1.msra.mxu0 %v333
  %399 = vmatprep.subr.mxu0 %v336
  %400 = vmatpush1.msra.mxu0 %v335
  %401 = vmatprep.subr.mxu0 %v338
  %402 = vmatpush1.msra.mxu0 %v337
  %403 = vmatprep.subr.mxu0 %v340
  %404 = vmatpush1.msra.mxu0 %v339
  %405 = vmatprep.subr.mxu0 %v342
  %406 = vmatpush1.msra.mxu0 %v341
  %407 = vmatprep.subr.mxu0 %v344
  %408 = vmatpush1.msra.mxu0 %v343
  %409 = vmatprep.subr.mxu0 %v346
  %410 = vmatpush1.msra.mxu0 %v345
  %411 = vmatprep.mubr.f32.mxu0 %v254
  %412 = vmatmul.mubr.f32.gmra.mrb[0].mxu0 %v252
  %v413 = vpop.f32.mrb[0].mxu0
  %v414 = vadd.f32 0.0, %v413
  %v415 = vpop.f32.mrb[0].mxu0
  %v416 = vadd.f32 0.0, %v415
  %417 = vmatprep.mubr.f32.mxu0 %v258
  %418 = vmatmul.mubr.f32.gmra.mrb[0].mxu0 %v256
  %v419 = vpop.f32.mrb[0].mxu0
  %v420 = vadd.f32 0.0, %v419
  %v421 = vpop.f32.mrb[0].mxu0
  %v422 = vadd.f32 0.0, %v421
  %423 = vmatprep.mubr.f32.mxu0 %v262
  %424 = vmatmul.mubr.f32.gmra.mrb[0].mxu0 %v260
  %v425 = vpop.f32.mrb[0].mxu0
  %v426 = vadd.f32 0.0, %v425
  %v427 = vpop.f32.mrb[0].mxu0
  %v428 = vadd.f32 0.0, %v427
  %429 = vmatprep.mubr.f32.mxu0 %v266
  %430 = vmatmul.mubr.f32.gmra.mrb[0].mxu0 %v264
  %v431 = vpop.f32.mrb[0].mxu0
  %v432 = vadd.f32 0.0, %v431
  %v433 = vpop.f32.mrb[0].mxu0
  %v434 = vadd.f32 0.0, %v433
  %435 = vmatprep.mubr.f32.mxu0 %v270
  %436 = vmatmul.mubr.f32.gmra.mrb[0].mxu0 %v268
  %v437 = vpop.f32.mrb[0].mxu0
  %v438 = vadd.f32 0.0, %v437
  %v439 = vpop.f32.mrb[0].mxu0
  %v440 = vadd.f32 0.0, %v439
  %441 = vmatprep.mubr.f32.mxu0 %v274
  %442 = vmatmul.mubr.f32.gmra.mrb[0].mxu0 %v272
  %v443 = vpop.f32.mrb[0].mxu0
  %v444 = vadd.f32 0.0, %v443
  %v445 = vpop.f32.mrb[0].mxu0
  %v446 = vadd.f32 0.0, %v445
  %447 = vmatprep.mubr.f32.mxu0 %v278
  %448 = vmatmul.mubr.f32.gmra.mrb[0].mxu0 %v276
  %v449 = vpop.f32.mrb[0].mxu0
  %v450 = vadd.f32 0.0, %v449
  %v451 = vpop.f32.mrb[0].mxu0
  %v452 = vadd.f32 0.0, %v451
  %453 = vmatprep.mubr.f32.mxu0 %v282
  %454 = vmatmul.mubr.f32.gmra.mrb[0].mxu0 %v280
  %v455 = vpop.f32.mrb[0].mxu0
  %v456 = vadd.f32 0.0, %v455
  %v457 = vpop.f32.mrb[0].mxu0
  %v458 = vadd.f32 0.0, %v457
  %459 = vdwg.mxu0
  %v460 = vmax.f32 %v414, 1e-30
  %v461 = vmax.f32 %v416, 1e-30
  %v462 = vmax.f32 %v420, 1e-30
  %v463 = vmax.f32 %v422, 1e-30
  %v464 = vmax.f32 %v426, 1e-30
  %v465 = vmax.f32 %v428, 1e-30
  %v466 = vmax.f32 %v432, 1e-30
  %v467 = vmax.f32 %v434, 1e-30
  %v468 = vmax.f32 %v438, 1e-30
  %v469 = vmax.f32 %v440, 1e-30
  %v470 = vmax.f32 %v444, 1e-30
  %v471 = vmax.f32 %v446, 1e-30
  %v472 = vmax.f32 %v450, 1e-30
  %v473 = vmax.f32 %v452, 1e-30
  %v474 = vmax.f32 %v456, 1e-30
  %v475 = vmax.f32 %v458, 1e-30
  %v476 = vrcp.pop %v460
  %v477 = vmul.f32 %v252, %v476
  %v478 = vrcp.pop %v461
  %v479 = vmul.f32 %v254, %v478
  %v480 = vrcp.pop %v462
  %v481 = vmul.f32 %v256, %v480
  %v482 = vrcp.pop %v463
  %v483 = vmul.f32 %v258, %v482
  %v484 = vrcp.pop %v464
  %v485 = vmul.f32 %v260, %v484
  %v486 = vrcp.pop %v465
  %v487 = vmul.f32 %v262, %v486
  %v488 = vrcp.pop %v466
  %v489 = vmul.f32 %v264, %v488
  %v490 = vrcp.pop %v467
  %v491 = vmul.f32 %v266, %v490
  %v492 = vrcp.pop %v468
  %v493 = vmul.f32 %v268, %v492
  %v494 = vrcp.pop %v469
  %v495 = vmul.f32 %v270, %v494
  %v496 = vrcp.pop %v470
  %v497 = vmul.f32 %v272, %v496
  %v498 = vrcp.pop %v471
  %v499 = vmul.f32 %v274, %v498
  %v500 = vrcp.pop %v472
  %v501 = vmul.f32 %v276, %v500
  %v502 = vrcp.pop %v473
  %v503 = vmul.f32 %v278, %v502
  %v504 = vrcp.pop %v474
  %v505 = vmul.f32 %v280, %v504
  %v506 = vrcp.pop %v475
  %v507 = vmul.f32 %v282, %v506
  %508 = vst [vmem:[%s4] sm:$0xff] %v477
  %509 = vst [vmem:[%s4 + $0x8] sm:$0xff] %v479
  %510 = vst [vmem:[%s4 + $0x10] sm:$0xff] %v481
  %511 = vst [vmem:[%s4 + $0x18] sm:$0xff] %v483
  %512 = vst [vmem:[%s4 + $0x20] sm:$0xff] %v485
  %513 = vst [vmem:[%s4 + $0x28] sm:$0xff] %v487
  %514 = vst [vmem:[%s4 + $0x30] sm:$0xff] %v489
  %515 = vst [vmem:[%s4 + $0x38] sm:$0xff] %v491
  %516 = vst [vmem:[%s4 + $0x40] sm:$0xff] %v493
  %517 = vst [vmem:[%s4 + $0x48] sm:$0xff] %v495
  %518 = vst [vmem:[%s4 + $0x50] sm:$0xff] %v497
  %519 = vst [vmem:[%s4 + $0x58] sm:$0xff] %v499
  %520 = vst [vmem:[%s4 + $0x60] sm:$0xff] %v501
  %521 = vst [vmem:[%s4 + $0x68] sm:$0xff] %v503
  %522 = vst [vmem:[%s4 + $0x70] sm:$0xff] %v505
  %523 = vst [vmem:[%s4 + $0x78] sm:$0xff] %v507
  // Predicated region
  $region18: #{actor_forward.3} parent=0 // pred_check
    _
  $region19: #{actor_forward.3} parent=0 // pred_check_branch
    %525 = sbr.rel (0) target = $region21
  $region20: #{actor_forward.3} parent=0 // pred_region
    _
  $region21: #{actor_forward.3} parent=0 // pred_fallthru
    _
  // Predicated region
  $region22: #{actor_forward.3} parent=0 // pred_check
    _
  $region23: #{actor_forward.3} parent=0 // pred_check_branch
    %527 = sbr.rel (0) target = $region25
  $region24: #{actor_forward.3} parent=0 // pred_region
    _
  $region25: #{actor_forward.3} parent=0 // pred_fallthru
    _

// kernel: actor_forward.2
$region0: #{actor_forward.2}
  #allocation0 [shape = 'u32[]', space=smem, size = 0x4, offset = 0x4, fixed_abs, tag = 'smem constant byte address 0x4 - core index']
  #allocation1 [shape = 'u32[144,128]{1,0:T(1,128)}', space=vmem, size = 0x12000, scoped, tag = 'internal scratch']
  #allocation2 [shape = 'f32[8,128]{1,0:T(8,128)}', space=vmem, size = 0x1000, scoped, tag = 'scratch operand']
  #allocation3 [shape = 'f32[8,128]{1,0:T(8,128)}', space=vmem, size = 0x1000, scoped, tag = 'scratch operand']
  #allocation4 [shape = 'f32[64,512]{1,0:T(8,128)}', space=vmem, size = 0x20000, scoped, tag = 'scratch operand']
  %s0 = inlined_call_operand.vmem [shape: f32[64,8], index: 0, kind: input, shape index: {}]
  %s1 = inlined_call_operand.vmem [shape: f32[8,128], index: 1, kind: input, shape index: {}, may-alias: {1,2}]
  %s2 = inlined_call_operand.vmem [shape: f32[8,128], index: 2, kind: input, shape index: {}, may-alias: {1,2}]
  %s3 = inlined_call_operand.vmem [shape: bf16[8,128], index: 3, kind: input, shape index: {}]
  %s4 = inlined_call_operand.vmem [shape: f32[1,128], index: 4, kind: input, shape index: {}]
  %s5 = inlined_call_operand.vmem [shape: bf16[128,512], index: 5, kind: input, shape index: {}]
  %s6 = inlined_call_operand.vmem [shape: f32[1,512], index: 6, kind: input, shape index: {}]
  %s7 = inlined_call_operand.vmem [shape: bf16[128,512], index: 7, kind: input, shape index: {}]
  %s8 = inlined_call_operand.vmem [shape: f32[64,128], index: 8, kind: output, shape index: {0}]
  %s9 = inlined_call_operand.vmem [shape: f32[8,128], index: 9, kind: output, shape index: {1}]
  %s10 = inlined_call_operand.vmem [shape: f32[8,128], index: 10, kind: output, shape index: {2}]
  %11 = xla_tuple %s8, %s9, %s10
  %s12 = sld [smem:[#allocation0]]
  $region62: #{actor_forward.2} parent=0
    _
  %s14 = ssub.s32 1, %s12
  %s15 = scalar_select 0, %s14, %s12
  // Predicated region
  $region2: #{actor_forward.2} parent=0 // pred_check
    _
  $region3: #{actor_forward.2} parent=0 // pred_check_branch
    %17 = sbr.rel (0) target = $region5
  $region4: #{actor_forward.2} parent=0 // pred_region
    _
  $region5: #{actor_forward.2} parent=0 // pred_fallthru
    _
  // Predicated region
  $region6: #{actor_forward.2} parent=0 // pred_check
    _
  $region7: #{actor_forward.2} parent=0 // pred_check_branch
    %19 = sbr.rel (0) target = $region9
  $region8: #{actor_forward.2} parent=0 // pred_region
    _
  $region9: #{actor_forward.2} parent=0 // pred_fallthru
    _
  // Predicated region
  $region10: #{actor_forward.2} parent=0 // pred_check
    _
  $region11: #{actor_forward.2} parent=0 // pred_check_branch
    %21 = sbr.rel (0) target = $region13
  $region12: #{actor_forward.2} parent=0 // pred_region
    _
  $region13: #{actor_forward.2} parent=0 // pred_fallthru
    _
  // Predicated region
  $region14: #{actor_forward.2} parent=0 // pred_check
    _
  $region15: #{actor_forward.2} parent=0 // pred_check_branch
    %23 = sbr.rel (0) target = $region17
  $region16: #{actor_forward.2} parent=0 // pred_region
    _
  $region17: #{actor_forward.2} parent=0 // pred_fallthru
    _
  // Predicated region
  $region18: #{actor_forward.2} parent=0 // pred_check
    _
  $region19: #{actor_forward.2} parent=0 // pred_check_branch
    %25 = sbr.rel (0) target = $region21
  $region20: #{actor_forward.2} parent=0 // pred_region
    _
  $region21: #{actor_forward.2} parent=0 // pred_fallthru
    _
  // Predicated region
  $region22: #{actor_forward.2} parent=0 // pred_check
    _
  $region23: #{actor_forward.2} parent=0 // pred_check_branch
    %27 = sbr.rel (0) target = $region25
  $region24: #{actor_forward.2} parent=0 // pred_region
    _
  $region25: #{actor_forward.2} parent=0 // pred_fallthru
    _
  // Predicated region
  $region26: #{actor_forward.2} parent=0 // pred_check
    _
  $region27: #{actor_forward.2} parent=0 // pred_check_branch
    %29 = sbr.rel (0) target = $region29
  $region28: #{actor_forward.2} parent=0 // pred_region
    _
  $region29: #{actor_forward.2} parent=0 // pred_fallthru
    _
  // Predicated region
  $region30: #{actor_forward.2} parent=0 // pred_check
    _
  $region31: #{actor_forward.2} parent=0 // pred_check_branch
    %31 = sbr.rel (0) target = $region33
  $region32: #{actor_forward.2} parent=0 // pred_region
    _
  $region33: #{actor_forward.2} parent=0 // pred_fallthru
    _
  %p33 = scmp.eq.s32.totalorder 0, 0
  // Predicated region
  $region34: #{actor_forward.2} parent=0 // pred_check
    %p34 = pneg %p33
  $region35: #{actor_forward.2} parent=0 // pred_check_branch
    %36 = sbr.rel (%p34) target = $region37
  $region36: #{actor_forward.2} parent=0 // pred_region
    %v37 = vld [vmem:[%s1] sm:$0xff]
    %38 = vst [vmem:[#allocation2] sm:$0xff] %v37
    %v39 = vld [vmem:[%s2] sm:$0xff]
    %40 = vst [vmem:[#allocation3] sm:$0xff] %v39
  $region37: #{actor_forward.2} parent=0 // pred_fallthru
    _
  %v41 = vld [vmem:[%s0] sm:$0xff]
  %v42 = vld [vmem:[%s0 + $0x8] sm:$0xff]
  %v43 = vld [vmem:[%s0 + $0x10] sm:$0xff]
  %v44 = vld [vmem:[%s0 + $0x18] sm:$0xff]
  %v45 = vld [vmem:[%s0 + $0x20] sm:$0xff]
  %v46 = vld [vmem:[%s0 + $0x28] sm:$0xff]
  %v47 = vld [vmem:[%s0 + $0x30] sm:$0xff]
  %v48 = vld [vmem:[%s0 + $0x38] sm:$0xff]
  %v49 = vpack.c.bf16 %v42, %v41
  %v50 = vpack.c.bf16 %v44, %v43
  %v51 = vpack.c.bf16 %v46, %v45
  %v52 = vpack.c.bf16 %v48, %v47
  %v53 = vld [vmem:[%s3] sm:$0xf]
  %v54 = vld [vmem:[%s4] sm:$0x1]
  %v56 = vlaneseq
  %v57 = vshrl.u32 %v56, 7
  %v58 = vsub.s32 0, %v57
  %v59 = vrot.slane %v54, %v58
  %vm61 = vcmask 64512
  %v63 = vsel %vm61, %v49, 0
  %v66 = vsel %vm61, %v50, 0
  %v69 = vsel %vm61, %v51, 0
  %v72 = vsel %vm61, %v52, 0
  %vm74 = vcmask 1043456
  %v76 = vsel %vm74, %v53, 0
  %78 = vmatprep.subr.bf16.mxu0 0
  %79 = vmatpush1.bf16.msra.mxu0 %v76
  %80 = vmatprep.subr.bf16.mxu0 0
  %81 = vmatpush1.bf16.msra.mxu0 0
  %82 = vmatprep.subr.bf16.mxu0 0
  %83 = vmatpush1.bf16.msra.mxu0 0
  %84 = vmatprep.subr.bf16.mxu0 0
  %85 = vmatpush1.bf16.msra.mxu0 0
  %86 = vmatprep.subr.bf16.mxu0 0
  %87 = vmatpush1.bf16.msra.mxu0 0
  %88 = vmatprep.subr.bf16.mxu0 0
  %89 = vmatpush1.bf16.msra.mxu0 0
  %90 = vmatprep.subr.bf16.mxu0 0
  %91 = vmatpush1.bf16.msra.mxu0 0
  %92 = vmatprep.subr.bf16.mxu0 0
  %93 = vmatpush1.bf16.msra.mxu0 0
  %94 = vmatprep.subr.bf16.mxu0 0
  %95 = vmatpush1.bf16.msra.mxu0 0
  %96 = vmatprep.subr.bf16.mxu0 0
  %97 = vmatpush1.bf16.msra.mxu0 0
  %98 = vmatprep.subr.bf16.mxu0 0
  %99 = vmatpush1.bf16.msra.mxu0 0
  %100 = vmatprep.subr.bf16.mxu0 0
  %101 = vmatpush1.bf16.msra.mxu0 0
  %102 = vmatprep.subr.bf16.mxu0 0
  %103 = vmatpush1.bf16.msra.mxu0 0
  %104 = vmatprep.subr.bf16.mxu0 0
  %105 = vmatpush1.bf16.msra.mxu0 0
  %106 = vmatprep.subr.bf16.mxu0 0
  %107 = vmatpush1.bf16.msra.mxu0 0
  %108 = vmatprep.subr.bf16.mxu0 0
  %109 = vmatpush1.bf16.msra.mxu0 0
  %110 = vmatprep.mubr.bf16.mxu0 0
  %111 = vmatmul.mubr.bf16.gmra.mrb[0].mxu0 %v63
  %v112 = vpop.f32.mrb[0].mxu0
  %v113 = vadd.f32 %v59, %v112
  %v114 = vpop.f32.mrb[0].mxu0
  %v115 = vpop.f32.mrb[0].mxu0
  %v116 = vadd.f32 %v59, %v115
  %v117 = vpop.f32.mrb[0].mxu0
  %118 = vmatprep.mubr.bf16.mxu0 0
  %119 = vmatmul.mubr.bf16.gmra.mrb[0].mxu0 %v66
  %v120 = vpop.f32.mrb[0].mxu0
  %v121 = vadd.f32 %v59, %v120
  %v122 = vpop.f32.mrb[0].mxu0
  %v123 = vpop.f32.mrb[0].mxu0
  %v124 = vadd.f32 %v59, %v123
  %v125 = vpop.f32.mrb[0].mxu0
  %126 = vmatprep.mubr.bf16.mxu0 0
  %127 = vmatmul.mubr.bf16.gmra.mrb[0].mxu0 %v69
  %v128 = vpop.f32.mrb[0].mxu0
  %v129 = vadd.f32 %v59, %v128
  %v130 = vpop.f32.mrb[0].mxu0
  %v131 = vpop.f32.mrb[0].mxu0
  %v132 = vadd.f32 %v59, %v131
  %v133 = vpop.f32.mrb[0].mxu0
  %134 = vmatprep.mubr.bf16.mxu0 0
  %135 = vmatmul.mubr.bf16.gmra.mrb[0].mxu0 %v72
  %v136 = vpop.f32.mrb[0].mxu0
  %v137 = vadd.f32 %v59, %v136
  %v138 = vpop.f32.mrb[0].mxu0
  %v139 = vpop.f32.mrb[0].mxu0
  %v140 = vadd.f32 %v59, %v139
  %v141 = vpop.f32.mrb[0].mxu0
  %142 = vdwg.mxu0
  %v143 = vmax.f32 %v113, 0.0
  %v144 = vmax.f32 %v116, 0.0
  %v145 = vmax.f32 %v121, 0.0
  %v146 = vmax.f32 %v124, 0.0
  %v147 = vmax.f32 %v129, 0.0
  %v148 = vmax.f32 %v132, 0.0
  %v149 = vmax.f32 %v137, 0.0
  %v150 = vmax.f32 %v140, 0.0
  %v151 = vpack.c.bf16 %v144, %v143
  %v152 = vpack.c.bf16 %v146, %v145
  %v153 = vpack.c.bf16 %v148, %v147
  %v154 = vpack.c.bf16 %v150, %v149
  %v155 = vld [vmem:[%s5] sm:$0xff]
  %v156 = vld [vmem:[%s5 + $0x8] sm:$0xff]
  %v157 = vld [vmem:[%s5 + $0x10] sm:$0xff]
  %v158 = vld [vmem:[%s5 + $0x18] sm:$0xff]
  %v159 = vld [vmem:[%s5 + $0x20] sm:$0xff]
  %v160 = vld [vmem:[%s5 + $0x28] sm:$0xff]
  %v161 = vld [vmem:[%s5 + $0x30] sm:$0xff]
  %v162 = vld [vmem:[%s5 + $0x38] sm:$0xff]
  %v163 = vld [vmem:[%s5 + $0x40] sm:$0xff]
  %v164 = vld [vmem:[%s5 + $0x48] sm:$0xff]
  %v165 = vld [vmem:[%s5 + $0x50] sm:$0xff]
  %v166 = vld [vmem:[%s5 + $0x58] sm:$0xff]
  %v167 = vld [vmem:[%s5 + $0x60] sm:$0xff]
  %v168 = vld [vmem:[%s5 + $0x68] sm:$0xff]
  %v169 = vld [vmem:[%s5 + $0x70] sm:$0xff]
  %v170 = vld [vmem:[%s5 + $0x78] sm:$0xff]
  %v171 = vld [vmem:[%s5 + $0x80] sm:$0xff]
  %v172 = vld [vmem:[%s5 + $0x88] sm:$0xff]
  %v173 = vld [vmem:[%s5 + $0x90] sm:$0xff]
  %v174 = vld [vmem:[%s5 + $0x98] sm:$0xff]
  %v175 = vld [vmem:[%s5 + $0xa0] sm:$0xff]
  %v176 = vld [vmem:[%s5 + $0xa8] sm:$0xff]
  %v177 = vld [vmem:[%s5 + $0xb0] sm:$0xff]
  %v178 = vld [vmem:[%s5 + $0xb8] sm:$0xff]
  %v179 = vld [vmem:[%s5 + $0xc0] sm:$0xff]
  %v180 = vld [vmem:[%s5 + $0xc8] sm:$0xff]
  %v181 = vld [vmem:[%s5 + $0xd0] sm:$0xff]
  %v182 = vld [vmem:[%s5 + $0xd8] sm:$0xff]
  %v183 = vld [vmem:[%s5 + $0xe0] sm:$0xff]
  %v184 = vld [vmem:[%s5 + $0xe8] sm:$0xff]
  %v185 = vld [vmem:[%s5 + $0xf0] sm:$0xff]
  %v186 = vld [vmem:[%s5 + $0xf8] sm:$0xff]
  %v187 = vld [vmem:[%s6] sm:$0xf]
  %v189 = vlaneseq
  %v190 = vshrl.u32 %v189, 7
  %v191 = vsub.s32 0, %v190
  %v192 = vrot.slane %v187, %v191
  %v193 = vlaneseq
  %v194 = vshrl.u32 %v193, 7
  %v195 = vsub.s32 1, %v194
  %v196 = vrot.slane %v187, %v195
  %v197 = vlaneseq
  %v198 = vshrl.u32 %v197, 7
  %v199 = vsub.s32 2, %v198
  %v200 = vrot.slane %v187, %v199
  %v201 = vlaneseq
  %v202 = vshrl.u32 %v201, 7
  %v203 = vsub.s32 3, %v202
  %v204 = vrot.slane %v187, %v203
  %v241 = vunpack.c.l.b16 %v155
  %v242 = vunpack.c.h.b16 %v155
  %v243 = vunpack.c.l.b16 %v156
  %v244 = vunpack.c.h.b16 %v156
  %v245 = vunpack.c.l.b16 %v157
  %v246 = vunpack.c.h.b16 %v157
  %v247 = vunpack.c.l.b16 %v158
  %v248 = vunpack.c.h.b16 %v158
  %v249 = vunpack.c.l.b16 %v159
  %v250 = vunpack.c.h.b16 %v159
  %v251 = vunpack.c.l.b16 %v160
  %v252 = vunpack.c.h.b16 %v160
  %v253 = vunpack.c.l.b16 %v161
  %v254 = vunpack.c.h.b16 %v161
  %v255 = vunpack.c.l.b16 %v162
  %v256 = vunpack.c.h.b16 %v162
  %v257 = vunpack.c.l.b16 %v163
  %v258 = vunpack.c.h.b16 %v163
  %v259 = vunpack.c.l.b16 %v164
  %v260 = vunpack.c.h.b16 %v164
  %v261 = vunpack.c.l.b16 %v165
  %v262 = vunpack.c.h.b16 %v165
  %v263 = vunpack.c.l.b16 %v166
  %v264 = vunpack.c.h.b16 %v166
  %v265 = vunpack.c.l.b16 %v167
  %v266 = vunpack.c.h.b16 %v167
  %v267 = vunpack.c.l.b16 %v168
  %v268 = vunpack.c.h.b16 %v168
  %v269 = vunpack.c.l.b16 %v169
  %v270 = vunpack.c.h.b16 %v169
  %v271 = vunpack.c.l.b16 %v170
  %v272 = vunpack.c.h.b16 %v170
  %v273 = vunpack.c.l.b16 %v171
  %v274 = vunpack.c.h.b16 %v171
  %v275 = vunpack.c.l.b16 %v172
  %v276 = vunpack.c.h.b16 %v172
  %v277 = vunpack.c.l.b16 %v173
  %v278 = vunpack.c.h.b16 %v173
  %v279 = vunpack.c.l.b16 %v174
  %v280 = vunpack.c.h.b16 %v174
  %v281 = vunpack.c.l.b16 %v175
  %v282 = vunpack.c.h.b16 %v175
  %v283 = vunpack.c.l.b16 %v176
  %v284 = vunpack.c.h.b16 %v176
  %v285 = vunpack.c.l.b16 %v177
  %v286 = vunpack.c.h.b16 %v177
  %v287 = vunpack.c.l.b16 %v178
  %v288 = vunpack.c.h.b16 %v178
  %v289 = vunpack.c.l.b16 %v179
  %v290 = vunpack.c.h.b16 %v179
  %v291 = vunpack.c.l.b16 %v180
  %v292 = vunpack.c.h.b16 %v180
  %v293 = vunpack.c.l.b16 %v181
  %v294 = vunpack.c.h.b16 %v181
  %v295 = vunpack.c.l.b16 %v182
  %v296 = vunpack.c.h.b16 %v182
  %v297 = vunpack.c.l.b16 %v183
  %v298 = vunpack.c.h.b16 %v183
  %v299 = vunpack.c.l.b16 %v184
  %v300 = vunpack.c.h.b16 %v184
  %v301 = vunpack.c.l.b16 %v185
  %v302 = vunpack.c.h.b16 %v185
  %v303 = vunpack.c.l.b16 %v186
  %v304 = vunpack.c.h.b16 %v186
  %v305 = vpack.c.b16 %v245, %v241
  %v306 = vpack.c.b16 %v246, %v242
  %v307 = vpack.c.b16 %v247, %v243
  %v308 = vpack.c.b16 %v248, %v244
  %v309 = vpack.c.b16 %v253, %v249
  %v310 = vpack.c.b16 %v254, %v250
  %v311 = vpack.c.b16 %v255, %v251
  %v312 = vpack.c.b16 %v256, %v252
  %v313 = vpack.c.b16 %v261, %v257
  %v314 = vpack.c.b16 %v262, %v258
  %v315 = vpack.c.b16 %v263, %v259
  %v316 = vpack.c.b16 %v264, %v260
  %v317 = vpack.c.b16 %v269, %v265
  %v318 = vpack.c.b16 %v270, %v266
  %v319 = vpack.c.b16 %v271, %v267
  %v320 = vpack.c.b16 %v272, %v268
  %v321 = vpack.c.b16 %v277, %v273
  %v322 = vpack.c.b16 %v278, %v274
  %v323 = vpack.c.b16 %v279, %v275
  %v324 = vpack.c.b16 %v280, %v276
  %v325 = vpack.c.b16 %v285, %v281
  %v326 = vpack.c.b16 %v286, %v282
  %v327 = vpack.c.b16 %v287, %v283
  %v328 = vpack.c.b16 %v288, %v284
  %v329 = vpack.c.b16 %v293, %v289
  %v330 = vpack.c.b16 %v294, %v290
  %v331 = vpack.c.b16 %v295, %v291
  %v332 = vpack.c.b16 %v296, %v292
  %v333 = vpack.c.b16 %v301, %v297
  %v334 = vpack.c.b16 %v302, %v298
  %v335 = vpack.c.b16 %v303, %v299
  %v336 = vpack.c.b16 %v304, %v300
  %369 = vmatprep.subr.bf16.mxu0 %v306
  %370 = vmatpush1.bf16.msra.mxu0 %v305
  %371 = vmatprep.subr.bf16.mxu0 %v310
  %372 = vmatpush1.bf16.msra.mxu0 %v309
  %373 = vmatprep.subr.bf16.mxu0 %v314
  %374 = vmatpush1.bf16.msra.mxu0 %v313
  %375 = vmatprep.subr.bf16.mxu0 %v318
  %376 = vmatpush1.bf16.msra.mxu0 %v317
  %377 = vmatprep.subr.bf16.mxu0 %v322
  %378 = vmatpush1.bf16.msra.mxu0 %v321
  %379 = vmatprep.subr.bf16.mxu0 %v326
  %380 = vmatpush1.bf16.msra.mxu0 %v325
  %381 = vmatprep.subr.bf16.mxu0 %v330
  %382 = vmatpush1.bf16.msra.mxu0 %v329
  %383 = vmatprep.subr.bf16.mxu0 %v334
  %384 = vmatpush1.bf16.msra.mxu0 %v333
  %385 = vmatprep.subr.bf16.mxu0 0
  %386 = vmatpush1.bf16.msra.mxu0 0
  %387 = vmatprep.subr.bf16.mxu0 0
  %388 = vmatpush1.bf16.msra.mxu0 0
  %389 = vmatprep.subr.bf16.mxu0 0
  %390 = vmatpush1.bf16.msra.mxu0 0
  %391 = vmatprep.subr.bf16.mxu0 0
  %392 = vmatpush1.bf16.msra.mxu0 0
  %393 = vmatprep.subr.bf16.mxu0 0
  %394 = vmatpush1.bf16.msra.mxu0 0
  %395 = vmatprep.subr.bf16.mxu0 0
  %396 = vmatpush1.bf16.msra.mxu0 0
  %397 = vmatprep.subr.bf16.mxu0 0
  %398 = vmatpush1.bf16.msra.mxu0 0
  %399 = vmatprep.subr.bf16.mxu0 0
  %400 = vmatpush1.bf16.msra.mxu0 0
  %401 = vmatprep.mubr.bf16.mxu0 0
  %402 = vmatmul.mubr.bf16.gmra.mrb[0].mxu0 %v151
  %v403 = vpop.f32.mrb[0].mxu0
  %v404 = vadd.f32 %v192, %v403
  %v405 = vpop.f32.mrb[0].mxu0
  %v406 = vadd.f32 %v196, %v405
  %v407 = vpop.f32.mrb[0].mxu0
  %v408 = vadd.f32 %v192, %v407
  %v409 = vpop.f32.mrb[0].mxu0
  %v410 = vadd.f32 %v196, %v409
  %411 = vmatprep.mubr.bf16.mxu0 0
  %412 = vmatmul.mubr.bf16.gmra.mrb[0].mxu0 %v152
  %v413 = vpop.f32.mrb[0].mxu0
  %v414 = vadd.f32 %v192, %v413
  %v415 = vpop.f32.mrb[0].mxu0
  %v416 = vadd.f32 %v196, %v415
  %v417 = vpop.f32.mrb[0].mxu0
  %v418 = vadd.f32 %v192, %v417
  %v419 = vpop.f32.mrb[0].mxu0
  %v420 = vadd.f32 %v196, %v419
  %421 = vmatprep.mubr.bf16.mxu0 0
  %422 = vmatmul.mubr.bf16.gmra.mrb[0].mxu0 %v153
  %v423 = vpop.f32.mrb[0].mxu0
  %v424 = vadd.f32 %v192, %v423
  %v425 = vpop.f32.mrb[0].mxu0
  %v426 = vadd.f32 %v196, %v425
  %v427 = vpop.f32.mrb[0].mxu0
  %v428 = vadd.f32 %v192, %v427
  %v429 = vpop.f32.mrb[0].mxu0
  %v430 = vadd.f32 %v196, %v429
  %431 = vmatprep.mubr.bf16.mxu0 0
  %432 = vmatmul.mubr.bf16.gmra.mrb[0].mxu0 %v154
  %v433 = vpop.f32.mrb[0].mxu0
  %v434 = vadd.f32 %v192, %v433
  %v435 = vpop.f32.mrb[0].mxu0
  %v436 = vadd.f32 %v196, %v435
  %v437 = vpop.f32.mrb[0].mxu0
  %v438 = vadd.f32 %v192, %v437
  %v439 = vpop.f32.mrb[0].mxu0
  %v440 = vadd.f32 %v196, %v439
  %441 = vdwg.mxu0
  %442 = vmatprep.subr.bf16.mxu0 %v308
  %443 = vmatpush1.bf16.msra.mxu0 %v307
  %444 = vmatprep.subr.bf16.mxu0 %v312
  %445 = vmatpush1.bf16.msra.mxu0 %v311
  %446 = vmatprep.subr.bf16.mxu0 %v316
  %447 = vmatpush1.bf16.msra.mxu0 %v315
  %448 = vmatprep.subr.bf16.mxu0 %v320
  %449 = vmatpush1.bf16.msra.mxu0 %v319
  %450 = vmatprep.subr.bf16.mxu0 %v324
  %451 = vmatpush1.bf16.msra.mxu0 %v323
  %452 = vmatprep.subr.bf16.mxu0 %v328
  %453 = vmatpush1.bf16.msra.mxu0 %v327
  %454 = vmatprep.subr.bf16.mxu0 %v332
  %455 = vmatpush1.bf16.msra.mxu0 %v331
  %456 = vmatprep.subr.bf16.mxu0 %v336
  %457 = vmatpush1.bf16.msra.mxu0 %v335
  %458 = vmatprep.subr.bf16.mxu0 0
  %459 = vmatpush1.bf16.msra.mxu0 0
  %460 = vmatprep.subr.bf16.mxu0 0
  %461 = vmatpush1.bf16.msra.mxu0 0
  %462 = vmatprep.subr.bf16.mxu0 0
  %463 = vmatpush1.bf16.msra.mxu0 0
  %464 = vmatprep.subr.bf16.mxu0 0
  %465 = vmatpush1.bf16.msra.mxu0 0
  %466 = vmatprep.subr.bf16.mxu0 0
  %467 = vmatpush1.bf16.msra.mxu0 0
  %468 = vmatprep.subr.bf16.mxu0 0
  %469 = vmatpush1.bf16.msra.mxu0 0
  %470 = vmatprep.subr.bf16.mxu0 0
  %471 = vmatpush1.bf16.msra.mxu0 0
  %472 = vmatprep.subr.bf16.mxu0 0
  %473 = vmatpush1.bf16.msra.mxu0 0
  %474 = vmatprep.mubr.bf16.mxu0 0
  %475 = vmatmul.mubr.bf16.gmra.mrb[0].mxu0 %v151
  %v476 = vpop.f32.mrb[0].mxu0
  %v477 = vadd.f32 %v200, %v476
  %v478 = vpop.f32.mrb[0].mxu0
  %v479 = vadd.f32 %v204, %v478
  %v480 = vpop.f32.mrb[0].mxu0
  %v481 = vadd.f32 %v200, %v480
  %v482 = vpop.f32.mrb[0].mxu0
  %v483 = vadd.f32 %v204, %v482
  %484 = vmatprep.mubr.bf16.mxu0 0
  %485 = vmatmul.mubr.bf16.gmra.mrb[0].mxu0 %v152
  %v486 = vpop.f32.mrb[0].mxu0
  %v487 = vadd.f32 %v200, %v486
  %v488 = vpop.f32.mrb[0].mxu0
  %v489 = vadd.f32 %v204, %v488
  %v490 = vpop.f32.mrb[0].mxu0
  %v491 = vadd.f32 %v200, %v490
  %v492 = vpop.f32.mrb[0].mxu0
  %v493 = vadd.f32 %v204, %v492
  %494 = vmatprep.mubr.bf16.mxu0 0
  %495 = vmatmul.mubr.bf16.gmra.mrb[0].mxu0 %v153
  %v496 = vpop.f32.mrb[0].mxu0
  %v497 = vadd.f32 %v200, %v496
  %v498 = vpop.f32.mrb[0].mxu0
  %v499 = vadd.f32 %v204, %v498
  %v500 = vpop.f32.mrb[0].mxu0
  %v501 = vadd.f32 %v200, %v500
  %v502 = vpop.f32.mrb[0].mxu0
  %v503 = vadd.f32 %v204, %v502
  %504 = vmatprep.mubr.bf16.mxu0 0
  %505 = vmatmul.mubr.bf16.gmra.mrb[0].mxu0 %v154
  %v506 = vpop.f32.mrb[0].mxu0
  %v507 = vadd.f32 %v200, %v506
  %v508 = vpop.f32.mrb[0].mxu0
  %v509 = vadd.f32 %v204, %v508
  %v510 = vpop.f32.mrb[0].mxu0
  %v511 = vadd.f32 %v200, %v510
  %v512 = vpop.f32.mrb[0].mxu0
  %v513 = vadd.f32 %v204, %v512
  %514 = vdwg.mxu0
  %515 = vst [vmem:[#allocation4] sm:$0xff] %v404
  %516 = vst [vmem:[#allocation4 + $0x8] sm:$0xff] %v406
  %517 = vst [vmem:[#allocation4 + $0x10] sm:$0xff] %v477
  %518 = vst [vmem:[#allocation4 + $0x18] sm:$0xff] %v479
  %519 = vst [vmem:[#allocation4 + $0x20] sm:$0xff] %v408
  %520 = vst [vmem:[#allocation4 + $0x28] sm:$0xff] %v410
  %521 = vst [vmem:[#allocation4 + $0x30] sm:$0xff] %v481
  %522 = vst [vmem:[#allocation4 + $0x38] sm:$0xff] %v483
  %523 = vst [vmem:[#allocation4 + $0x40] sm:$0xff] %v414
  %524 = vst [vmem:[#allocation4 + $0x48] sm:$0xff] %v416
  %525 = vst [vmem:[#allocation4 + $0x50] sm:$0xff] %v487
  %526 = vst [vmem:[#allocation4 + $0x58] sm:$0xff] %v489
  %527 = vst [vmem:[#allocation4 + $0x60] sm:$0xff] %v418
  %528 = vst [vmem:[#allocation4 + $0x68] sm:$0xff] %v420
  %529 = vst [vmem:[#allocation4 + $0x70] sm:$0xff] %v491
  %530 = vst [vmem:[#allocation4 + $0x78] sm:$0xff] %v493
  %531 = vst [vmem:[#allocation4 + $0x80] sm:$0xff] %v424
  %532 = vst [vmem:[#allocation4 + $0x88] sm:$0xff] %v426
  %533 = vst [vmem:[#allocation4 + $0x90] sm:$0xff] %v497
  %534 = vst [vmem:[#allocation4 + $0x98] sm:$0xff] %v499
  %535 = vst [vmem:[#allocation4 + $0xa0] sm:$0xff] %v428
  %536 = vst [vmem:[#allocation4 + $0xa8] sm:$0xff] %v430
  %537 = vst [vmem:[#allocation4 + $0xb0] sm:$0xff] %v501
  %538 = vst [vmem:[#allocation4 + $0xb8] sm:$0xff] %v503
  %539 = vst [vmem:[#allocation4 + $0xc0] sm:$0xff] %v434
  %540 = vst [vmem:[#allocation4 + $0xc8] sm:$0xff] %v436
  %541 = vst [vmem:[#allocation4 + $0xd0] sm:$0xff] %v507
  %542 = vst [vmem:[#allocation4 + $0xd8] sm:$0xff] %v509
  %543 = vst [vmem:[#allocation4 + $0xe0] sm:$0xff] %v438
  %544 = vst [vmem:[#allocation4 + $0xe8] sm:$0xff] %v440
  %545 = vst [vmem:[#allocation4 + $0xf0] sm:$0xff] %v511
  %546 = vst [vmem:[#allocation4 + $0xf8] sm:$0xff] %v513
  %v547 = vld [vmem:[%s7] sm:$0xff]
  %v548 = vld [vmem:[%s7 + $0x8] sm:$0xff]
  %v549 = vld [vmem:[%s7 + $0x10] sm:$0xff]
  %v550 = vld [vmem:[%s7 + $0x18] sm:$0xff]
  %v551 = vld [vmem:[%s7 + $0x20] sm:$0xff]
  %v552 = vld [vmem:[%s7 + $0x28] sm:$0xff]
  %v553 = vld [vmem:[%s7 + $0x30] sm:$0xff]
  %v554 = vld [vmem:[%s7 + $0x38] sm:$0xff]
  %v555 = vld [vmem:[%s7 + $0x40] sm:$0xff]
  %v556 = vld [vmem:[%s7 + $0x48] sm:$0xff]
  %v557 = vld [vmem:[%s7 + $0x50] sm:$0xff]
  %v558 = vld [vmem:[%s7 + $0x58] sm:$0xff]
  %v559 = vld [vmem:[%s7 + $0x60] sm:$0xff]
  %v560 = vld [vmem:[%s7 + $0x68] sm:$0xff]
  %v561 = vld [vmem:[%s7 + $0x70] sm:$0xff]
  %v562 = vld [vmem:[%s7 + $0x78] sm:$0xff]
  %v563 = vld [vmem:[%s7 + $0x80] sm:$0xff]
  %v564 = vld [vmem:[%s7 + $0x88] sm:$0xff]
  %v565 = vld [vmem:[%s7 + $0x90] sm:$0xff]
  %v566 = vld [vmem:[%s7 + $0x98] sm:$0xff]
  %v567 = vld [vmem:[%s7 + $0xa0] sm:$0xff]
  %v568 = vld [vmem:[%s7 + $0xa8] sm:$0xff]
  %v569 = vld [vmem:[%s7 + $0xb0] sm:$0xff]
  %v570 = vld [vmem:[%s7 + $0xb8] sm:$0xff]
  %v571 = vld [vmem:[%s7 + $0xc0] sm:$0xff]
  %v572 = vld [vmem:[%s7 + $0xc8] sm:$0xff]
  %v573 = vld [vmem:[%s7 + $0xd0] sm:$0xff]
  %v574 = vld [vmem:[%s7 + $0xd8] sm:$0xff]
  %v575 = vld [vmem:[%s7 + $0xe0] sm:$0xff]
  %v576 = vld [vmem:[%s7 + $0xe8] sm:$0xff]
  %v577 = vld [vmem:[%s7 + $0xf0] sm:$0xff]
  %v578 = vld [vmem:[%s7 + $0xf8] sm:$0xff]
  %v579 = vld [vmem:[#allocation2] sm:$0xff]
  %v580 = vld [vmem:[#allocation3] sm:$0xff]
  %s581 = smul.u32 0, 4
  %s582 = smul.addr %s581, 8
  %s583 = scalar_lea.vmem [#allocation4], %s582
  %v584 = vld [vmem:[%s583] sm:$0xff]
  %v585 = vld [vmem:[%s583 + $0x8] sm:$0xff]
  %v586 = vld [vmem:[%s583 + $0x10] sm:$0xff]
  %v587 = vld [vmem:[%s583 + $0x18] sm:$0xff]
  %v588 = vpack.c.bf16 %v579, %v579
  %v621 = vunpack.c.l.b16 %v547
  %v622 = vunpack.c.h.b16 %v547
  %v623 = vunpack.c.l.b16 %v548
  %v624 = vunpack.c.h.b16 %v548
  %v625 = vunpack.c.l.b16 %v549
  %v626 = vunpack.c.h.b16 %v549
  %v627 = vunpack.c.l.b16 %v550
  %v628 = vunpack.c.h.b16 %v550
  %v629 = vunpack.c.l.b16 %v551
  %v630 = vunpack.c.h.b16 %v551
  %v631 = vunpack.c.l.b16 %v552
  %v632 = vunpack.c.h.b16 %v552
  %v633 = vunpack.c.l.b16 %v553
  %v634 = vunpack.c.h.b16 %v553
  %v635 = vunpack.c.l.b16 %v554
  %v636 = vunpack.c.h.b16 %v554
  %v637 = vunpack.c.l.b16 %v555
  %v638 = vunpack.c.h.b16 %v555
  %v639 = vunpack.c.l.b16 %v556
  %v640 = vunpack.c.h.b16 %v556
  %v641 = vunpack.c.l.b16 %v557
  %v642 = vunpack.c.h.b16 %v557
  %v643 = vunpack.c.l.b16 %v558
  %v644 = vunpack.c.h.b16 %v558
  %v645 = vunpack.c.l.b16 %v559
  %v646 = vunpack.c.h.b16 %v559
  %v647 = vunpack.c.l.b16 %v560
  %v648 = vunpack.c.h.b16 %v560
  %v649 = vunpack.c.l.b16 %v561
  %v650 = vunpack.c.h.b16 %v561
  %v651 = vunpack.c.l.b16 %v562
  %v652 = vunpack.c.h.b16 %v562
  %v653 = vunpack.c.l.b16 %v563
  %v654 = vunpack.c.h.b16 %v563
  %v655 = vunpack.c.l.b16 %v564
  %v656 = vunpack.c.h.b16 %v564
  %v657 = vunpack.c.l.b16 %v565
  %v658 = vunpack.c.h.b16 %v565
  %v659 = vunpack.c.l.b16 %v566
  %v660 = vunpack.c.h.b16 %v566
  %v661 = vunpack.c.l.b16 %v567
  %v662 = vunpack.c.h.b16 %v567
  %v663 = vunpack.c.l.b16 %v568
  %v664 = vunpack.c.h.b16 %v568
  %v665 = vunpack.c.l.b16 %v569
  %v666 = vunpack.c.h.b16 %v569
  %v667 = vunpack.c.l.b16 %v570
  %v668 = vunpack.c.h.b16 %v570
  %v669 = vunpack.c.l.b16 %v571
  %v670 = vunpack.c.h.b16 %v571
  %v671 = vunpack.c.l.b16 %v572
  %v672 = vunpack.c.h.b16 %v572
  %v673 = vunpack.c.l.b16 %v573
  %v674 = vunpack.c.h.b16 %v573
  %v675 = vunpack.c.l.b16 %v574
  %v676 = vunpack.c.h.b16 %v574
  %v677 = vunpack.c.l.b16 %v575
  %v678 = vunpack.c.h.b16 %v575
  %v679 = vunpack.c.l.b16 %v576
  %v680 = vunpack.c.h.b16 %v576
  %v681 = vunpack.c.l.b16 %v577
  %v682 = vunpack.c.h.b16 %v577
  %v683 = vunpack.c.l.b16 %v578
  %v684 = vunpack.c.h.b16 %v578
  %v685 = vpack.c.b16 %v625, %v621
  %v686 = vpack.c.b16 %v626, %v622
  %v687 = vpack.c.b16 %v627, %v623
  %v688 = vpack.c.b16 %v628, %v624
  %v689 = vpack.c.b16 %v633, %v629
  %v690 = vpack.c.b16 %v634, %v630
  %v691 = vpack.c.b16 %v635, %v631
  %v692 = vpack.c.b16 %v636, %v632
  %v693 = vpack.c.b16 %v641, %v637
  %v694 = vpack.c.b16 %v642, %v638
  %v695 = vpack.c.b16 %v643, %v639
  %v696 = vpack.c.b16 %v644, %v640
  %v697 = vpack.c.b16 %v649, %v645
  %v698 = vpack.c.b16 %v650, %v646
  %v699 = vpack.c.b16 %v651, %v647
  %v700 = vpack.c.b16 %v652, %v648
  %v701 = vpack.c.b16 %v657, %v653
  %v702 = vpack.c.b16 %v658, %v654
  %v703 = vpack.c.b16 %v659, %v655
  %v704 = vpack.c.b16 %v660, %v656
  %v705 = vpack.c.b16 %v665, %v661
  %v706 = vpack.c.b16 %v666, %v662
  %v707 = vpack.c.b16 %v667, %v663
  %v708 = vpack.c.b16 %v668, %v664
  %v709 = vpack.c.b16 %v673, %v669
  %v710 = vpack.c.b16 %v674, %v670
  %v711 = vpack.c.b16 %v675, %v671
  %v712 = vpack.c.b16 %v676, %v672
  %v713 = vpack.c.b16 %v681, %v677
  %v714 = vpack.c.b16 %v682, %v678
  %v715 = vpack.c.b16 %v683, %v679
  %v716 = vpack.c.b16 %v684, %v680
  %749 = vmatprep.subr.bf16.mxu0 %v686
  %750 = vmatpush1.bf16.msra.mxu0 %v685
  %751 = vmatprep.subr.bf16.mxu0 %v690
  %752 = vmatpush1.bf16.msra.mxu0 %v689
  %753 = vmatprep.subr.bf16.mxu0 %v694
  %754 = vmatpush1.bf16.msra.mxu0 %v693
  %755 = vmatprep.subr.bf16.mxu0 %v698
  %756 = vmatpush1.bf16.msra.mxu0 %v697
  %757 = vmatprep.subr.bf16.mxu0 %v702
  %758 = vmatpush1.bf16.msra.mxu0 %v701
  %759 = vmatprep.subr.bf16.mxu0 %v706
  %760 = vmatpush1.bf16.msra.mxu0 %v705
  %761 = vmatprep.subr.bf16.mxu0 %v710
  %762 = vmatpush1.bf16.msra.mxu0 %v709
  %763 = vmatprep.subr.bf16.mxu0 %v714
  %764 = vmatpush1.bf16.msra.mxu0 %v713
  %765 = vmatprep.subr.bf16.mxu0 0
  %766 = vmatpush1.bf16.msra.mxu0 0
  %767 = vmatprep.subr.bf16.mxu0 0
  %768 = vmatpush1.bf16.msra.mxu0 0
  %769 = vmatprep.subr.bf16.mxu0 0
  %770 = vmatpush1.bf16.msra.mxu0 0
  %771 = vmatprep.subr.bf16.mxu0 0
  %772 = vmatpush1.bf16.msra.mxu0 0
  %773 = vmatprep.subr.bf16.mxu0 0
  %774 = vmatpush1.bf16.msra.mxu0 0
  %775 = vmatprep.subr.bf16.mxu0 0
  %776 = vmatpush1.bf16.msra.mxu0 0
  %777 = vmatprep.subr.bf16.mxu0 0
  %778 = vmatpush1.bf16.msra.mxu0 0
  %779 = vmatprep.subr.bf16.mxu0 0
  %780 = vmatpush1.bf16.msra.mxu0 0
  %781 = vmatprep.mubr.bf16.mxu0 0
  %782 = vmatmul.mubr.bf16.gmra.mrb[0].mxu0 %v588
  %v783 = vpop.f32.mrb[0].mxu0
  %v784 = vadd.f32 0.0, %v783
  %v785 = vpop.f32.mrb[0].mxu0
  %v786 = vadd.f32 0.0, %v785
  %v787 = vpop.f32.mrb[0].mxu0
  %v788 = vpop.f32.mrb[0].mxu0
  %789 = vdwg.mxu0
  %790 = vmatprep.subr.bf16.mxu0 %v688
  %791 = vmatpush1.bf16.msra.mxu0 %v687
  %792 = vmatprep.subr.bf16.mxu0 %v692
  %793 = vmatpush1.bf16.msra.mxu0 %v691
  %794 = vmatprep.subr.bf16.mxu0 %v696
  %795 = vmatpush1.bf16.msra.mxu0 %v695
  %796 = vmatprep.subr.bf16.mxu0 %v700
  %797 = vmatpush1.bf16.msra.mxu0 %v699
  %798 = vmatprep.subr.bf16.mxu0 %v704
  %799 = vmatpush1.bf16.msra.mxu0 %v703
  %800 = vmatprep.subr.bf16.mxu0 %v708
  %801 = vmatpush1.bf16.msra.mxu0 %v707
  %802 = vmatprep.subr.bf16.mxu0 %v712
  %803 = vmatpush1.bf16.msra.mxu0 %v711
  %804 = vmatprep.subr.bf16.mxu0 %v716
  %805 = vmatpush1.bf16.msra.mxu0 %v715
  %806 = vmatprep.subr.bf16.mxu0 0
  %807 = vmatpush1.bf16.msra.mxu0 0
  %808 = vmatprep.subr.bf16.mxu0 0
  %809 = vmatpush1.bf16.msra.mxu0 0
  %810 = vmatprep.subr.bf16.mxu0 0
  %811 = vmatpush1.bf16.msra.mxu0 0
  %812 = vmatprep.subr.bf16.mxu0 0
  %813 = vmatpush1.bf16.msra.mxu0 0
  %814 = vmatprep.subr.bf16.mxu0 0
  %815 = vmatpush1.bf16.msra.mxu0 0
  %816 = vmatprep.subr.bf16.mxu0 0
  %817 = vmatpush1.bf16.msra.mxu0 0
  %818 = vmatprep.subr.bf16.mxu0 0
  %819 = vmatpush1.bf16.msra.mxu0 0
  %820 = vmatprep.subr.bf16.mxu0 0
  %821 = vmatpush1.bf16.msra.mxu0 0
  %822 = vmatprep.mubr.bf16.mxu0 0
  %823 = vmatmul.mubr.bf16.gmra.mrb[0].mxu0 %v588
  %v824 = vpop.f32.mrb[0].mxu0
  %v825 = vadd.f32 0.0, %v824
  %v826 = vpop.f32.mrb[0].mxu0
  %v827 = vadd.f32 0.0, %v826
  %v828 = vpop.f32.mrb[0].mxu0
  %v829 = vpop.f32.mrb[0].mxu0
  %830 = vdwg.mxu0
  %v831 = vadd.f32 %v584, %v784
  %v832 = vadd.f32 %v585, %v786
  %v833 = vadd.f32 %v586, %v825
  %v834 = vadd.f32 %v587, %v827
  %v835 = vmul.f32 %v831, 0.5
  %v836 = vmul.f32 %v832, 0.5
  %v837 = vmul.f32 %v833, 0.5
  %v838 = vtanh.pop %v835
  %v839 = vtanh.pop %v836
  %v840 = vtanh.pop %v837
  %v841 = vmul.f32 %v838, 0.5
  %v842 = vmul.f32 %v839, 0.5
  %v843 = vmul.f32 %v840, 0.5
  %v844 = vadd.f32 %v841, 0.5
  %v845 = vadd.f32 %v842, 0.5
  %v846 = vadd.f32 %v843, 0.5
  %v847 = vtanh.pop %v834
  %v848 = vmul.f32 %v845, %v580
  %v849 = vmul.f32 %v844, %v847
  %v850 = vadd.f32 %v848, %v849
  %v851 = vtanh.pop %v850
  %v852 = vmul.f32 %v846, %v851
  %853 = vst [vmem:[%s8] sm:$0xff] %v852
  %s854 = smul.u32 1, 4
  %s855 = smul.addr %s854, 8
  %s856 = scalar_lea.vmem [#allocation4], %s855
  %v857 = vld [vmem:[%s856] sm:$0xff]
  %v858 = vld [vmem:[%s856 + $0x8] sm:$0xff]
  %v859 = vld [vmem:[%s856 + $0x10] sm:$0xff]
  %v860 = vld [vmem:[%s856 + $0x18] sm:$0xff]
  %v861 = vpack.c.bf16 %v852, %v852
  %862 = vmatprep.subr.bf16.mxu0 %v686
  %863 = vmatpush1.bf16.msra.mxu0 %v685
  %864 = vmatprep.subr.bf16.mxu0 %v690
  %865 = vmatpush1.bf16.msra.mxu0 %v689
  %866 = vmatprep.subr.bf16.mxu0 %v694
  %867 = vmatpush1.bf16.msra.mxu0 %v693
  %868 = vmatprep.subr.bf16.mxu0 %v698
  %869 = vmatpush1.bf16.msra.mxu0 %v697
  %870 = vmatprep.subr.bf16.mxu0 %v702
  %871 = vmatpush1.bf16.msra.mxu0 %v701
  %872 = vmatprep.subr.bf16.mxu0 %v706
  %873 = vmatpush1.bf16.msra.mxu0 %v705
  %874 = vmatprep.subr.bf16.mxu0 %v710
  %875 = vmatpush1.bf16.msra.mxu0 %v709
  %876 = vmatprep.subr.bf16.mxu0 %v714
  %877 = vmatpush1.bf16.msra.mxu0 %v713
  %878 = vmatprep.subr.bf16.mxu0 0
  %879 = vmatpush1.bf16.msra.mxu0 0
  %880 = vmatprep.subr.bf16.mxu0 0
  %881 = vmatpush1.bf16.msra.mxu0 0
  %882 = vmatprep.subr.bf16.mxu0 0
  %883 = vmatpush1.bf16.msra.mxu0 0
  %884 = vmatprep.subr.bf16.mxu0 0
  %885 = vmatpush1.bf16.msra.mxu0 0
  %886 = vmatprep.subr.bf16.mxu0 0
  %887 = vmatpush1.bf16.msra.mxu0 0
  %888 = vmatprep.subr.bf16.mxu0 0
  %889 = vmatpush1.bf16.msra.mxu0 0
  %890 = vmatprep.subr.bf16.mxu0 0
  %891 = vmatpush1.bf16.msra.mxu0 0
  %892 = vmatprep.subr.bf16.mxu0 0
  %893 = vmatpush1.bf16.msra.mxu0 0
  %894 = vmatprep.mubr.bf16.mxu0 0
  %895 = vmatmul.mubr.bf16.gmra.mrb[0].mxu0 %v861
  %v896 = vpop.f32.mrb[0].mxu0
  %v897 = vadd.f32 0.0, %v896
  %v898 = vpop.f32.mrb[0].mxu0
  %v899 = vadd.f32 0.0, %v898
  %v900 = vpop.f32.mrb[0].mxu0
  %v901 = vpop.f32.mrb[0].mxu0
  %902 = vdwg.mxu0
  %903 = vmatprep.subr.bf16.mxu0 %v688
  %904 = vmatpush1.bf16.msra.mxu0 %v687
  %905 = vmatprep.subr.bf16.mxu0 %v692
  %906 = vmatpush1.bf16.msra.mxu0 %v691
  %907 = vmatprep.subr.bf16.mxu0 %v696
  %908 = vmatpush1.bf16.msra.mxu0 %v695
  %909 = vmatprep.subr.bf16.mxu0 %v700
  %910 = vmatpush1.bf16.msra.mxu0 %v699
  %911 = vmatprep.subr.bf16.mxu0 %v704
  %912 = vmatpush1.bf16.msra.mxu0 %v703
  %913 = vmatprep.subr.bf16.mxu0 %v708
  %914 = vmatpush1.bf16.msra.mxu0 %v707
  %915 = vmatprep.subr.bf16.mxu0 %v712
  %916 = vmatpush1.bf16.msra.mxu0 %v711
  %917 = vmatprep.subr.bf16.mxu0 %v716
  %918 = vmatpush1.bf16.msra.mxu0 %v715
  %919 = vmatprep.subr.bf16.mxu0 0
  %920 = vmatpush1.bf16.msra.mxu0 0
  %921 = vmatprep.subr.bf16.mxu0 0
  %922 = vmatpush1.bf16.msra.mxu0 0
  %923 = vmatprep.subr.bf16.mxu0 0
  %924 = vmatpush1.bf16.msra.mxu0 0
  %925 = vmatprep.subr.bf16.mxu0 0
  %926 = vmatpush1.bf16.msra.mxu0 0
  %927 = vmatprep.subr.bf16.mxu0 0
  %928 = vmatpush1.bf16.msra.mxu0 0
  %929 = vmatprep.subr.bf16.mxu0 0
  %930 = vmatpush1.bf16.msra.mxu0 0
  %931 = vmatprep.subr.bf16.mxu0 0
  %932 = vmatpush1.bf16.msra.mxu0 0
  %933 = vmatprep.subr.bf16.mxu0 0
  %934 = vmatpush1.bf16.msra.mxu0 0
  %935 = vmatprep.mubr.bf16.mxu0 0
  %936 = vmatmul.mubr.bf16.gmra.mrb[0].mxu0 %v861
  %v937 = vpop.f32.mrb[0].mxu0
  %v938 = vadd.f32 0.0, %v937
  %v939 = vpop.f32.mrb[0].mxu0
  %v940 = vadd.f32 0.0, %v939
  %v941 = vpop.f32.mrb[0].mxu0
  %v942 = vpop.f32.mrb[0].mxu0
  %943 = vdwg.mxu0
  %v944 = vadd.f32 %v857, %v897
  %v945 = vadd.f32 %v858, %v899
  %v946 = vadd.f32 %v859, %v938
  %v947 = vadd.f32 %v860, %v940
  %v948 = vmul.f32 %v944, 0.5
  %v949 = vmul.f32 %v945, 0.5
  %v950 = vmul.f32 %v946, 0.5
  %v951 = vtanh.pop %v948
  %v952 = vtanh.pop %v949
  %v953 = vtanh.pop %v950
  %v954 = vmul.f32 %v951, 0.5
  %v955 = vmul.f32 %v952, 0.5
  %v956 = vmul.f32 %v953, 0.5
  %v957 = vadd.f32 %v954, 0.5
  %v958 = vadd.f32 %v955, 0.5
  %v959 = vadd.f32 %v956, 0.5
  %v960 = vtanh.pop %v947
  %v961 = vmul.f32 %v958, %v850
  %v962 = vmul.f32 %v957, %v960
  %v963 = vadd.f32 %v961, %v962
  %v964 = vtanh.pop %v963
  %v965 = vmul.f32 %v959, %v964
  %s966 = scalar_lea.vmem %s8, 8
  %967 = vst [vmem:[%s966] sm:$0xff] %v965
  %s968 = smul.u32 2, 4
  %s969 = smul.addr %s968, 8
  %s970 = scalar_lea.vmem [#allocation4], %s969
  %v971 = vld [vmem:[%s970] sm:$0xff]
  %v972 = vld [vmem:[%s970 + $0x8] sm:$0xff]
  %v973 = vld [vmem:[%s970 + $0x10] sm:$0xff]
  %v974 = vld [vmem:[%s970 + $0x18] sm:$0xff]
  %v975 = vpack.c.bf16 %v965, %v965
  %976 = vmatprep.subr.bf16.mxu0 %v686
  %977 = vmatpush1.bf16.msra.mxu0 %v685
  %978 = vmatprep.subr.bf16.mxu0 %v690
  %979 = vmatpush1.bf16.msra.mxu0 %v689
  %980 = vmatprep.subr.bf16.mxu0 %v694
  %981 = vmatpush1.bf16.msra.mxu0 %v693
  %982 = vmatprep.subr.bf16.mxu0 %v698
  %983 = vmatpush1.bf16.msra.mxu0 %v697
  %984 = vmatprep.subr.bf16.mxu0 %v702
  %985 = vmatpush1.bf16.msra.mxu0 %v701
  %986 = vmatprep.subr.bf16.mxu0 %v706
  %987 = vmatpush1.bf16.msra.mxu0 %v705
  %988 = vmatprep.subr.bf16.mxu0 %v710
  %989 = vmatpush1.bf16.msra.mxu0 %v709
  %990 = vmatprep.subr.bf16.mxu0 %v714
  %991 = vmatpush1.bf16.msra.mxu0 %v713
  %992 = vmatprep.subr.bf16.mxu0 0
  %993 = vmatpush1.bf16.msra.mxu0 0
  %994 = vmatprep.subr.bf16.mxu0 0
  %995 = vmatpush1.bf16.msra.mxu0 0
  %996 = vmatprep.subr.bf16.mxu0 0
  %997 = vmatpush1.bf16.msra.mxu0 0
  %998 = vmatprep.subr.bf16.mxu0 0
  %999 = vmatpush1.bf16.msra.mxu0 0
  %1000 = vmatprep.subr.bf16.mxu0 0
  %1001 = vmatpush1.bf16.msra.mxu0 0
  %1002 = vmatprep.subr.bf16.mxu0 0
  %1003 = vmatpush1.bf16.msra.mxu0 0
  %1004 = vmatprep.subr.bf16.mxu0 0
  %1005 = vmatpush1.bf16.msra.mxu0 0
  %1006 = vmatprep.subr.bf16.mxu0 0
  %1007 = vmatpush1.bf16.msra.mxu0 0
  %1008 = vmatprep.mubr.bf16.mxu0 0
  %1009 = vmatmul.mubr.bf16.gmra.mrb[0].mxu0 %v975
  %v1010 = vpop.f32.mrb[0].mxu0
  %v1011 = vadd.f32 0.0, %v1010
  %v1012 = vpop.f32.mrb[0].mxu0
  %v1013 = vadd.f32 0.0, %v1012
  %v1014 = vpop.f32.mrb[0].mxu0
  %v1015 = vpop.f32.mrb[0].mxu0
  %1016 = vdwg.mxu0
  %1017 = vmatprep.subr.bf16.mxu0 %v688
  %1018 = vmatpush1.bf16.msra.mxu0 %v687
  %1019 = vmatprep.subr.bf16.mxu0 %v692
  %1020 = vmatpush1.bf16.msra.mxu0 %v691
  %1021 = vmatprep.subr.bf16.mxu0 %v696
  %1022 = vmatpush1.bf16.msra.mxu0 %v695
  %1023 = vmatprep.subr.bf16.mxu0 %v700
  %1024 = vmatpush1.bf16.msra.mxu0 %v699
  %1025 = vmatprep.subr.bf16.mxu0 %v704
  %1026 = vmatpush1.bf16.msra.mxu0 %v703
  %1027 = vmatprep.subr.bf16.mxu0 %v708
  %1028 = vmatpush1.bf16.msra.mxu0 %v707
  %1029 = vmatprep.subr.bf16.mxu0 %v712
  %1030 = vmatpush1.bf16.msra.mxu0 %v711
  %1031 = vmatprep.subr.bf16.mxu0 %v716
  %1032 = vmatpush1.bf16.msra.mxu0 %v715
  %1033 = vmatprep.subr.bf16.mxu0 0
  %1034 = vmatpush1.bf16.msra.mxu0 0
  %1035 = vmatprep.subr.bf16.mxu0 0
  %1036 = vmatpush1.bf16.msra.mxu0 0
  %1037 = vmatprep.subr.bf16.mxu0 0
  %1038 = vmatpush1.bf16.msra.mxu0 0
  %1039 = vmatprep.subr.bf16.mxu0 0
  %1040 = vmatpush1.bf16.msra.mxu0 0
  %1041 = vmatprep.subr.bf16.mxu0 0
  %1042 = vmatpush1.bf16.msra.mxu0 0
  %1043 = vmatprep.subr.bf16.mxu0 0
  %1044 = vmatpush1.bf16.msra.mxu0 0
  %1045 = vmatprep.subr.bf16.mxu0 0
  %1046 = vmatpush1.bf16.msra.mxu0 0
  %1047 = vmatprep.subr.bf16.mxu0 0
  %1048 = vmatpush1.bf16.msra.mxu0 0
  %1049 = vmatprep.mubr.bf16.mxu0 0
  %1050 = vmatmul.mubr.bf16.gmra.mrb[0].mxu0 %v975
  %v1051 = vpop.f32.mrb[0].mxu0
  %v1052 = vadd.f32 0.0, %v1051
  %v1053 = vpop.f32.mrb[0].mxu0
  %v1054 = vadd.f32 0.0, %v1053
  %v1055 = vpop.f32.mrb[0].mxu0
  %v1056 = vpop.f32.mrb[0].mxu0
  %1057 = vdwg.mxu0
  %v1058 = vadd.f32 %v971, %v1011
  %v1059 = vadd.f32 %v972, %v1013
  %v1060 = vadd.f32 %v973, %v1052
  %v1061 = vadd.f32 %v974, %v1054
  %v1062 = vmul.f32 %v1058, 0.5
  %v1063 = vmul.f32 %v1059, 0.5
  %v1064 = vmul.f32 %v1060, 0.5
  %v1065 = vtanh.pop %v1062
  %v1066 = vtanh.pop %v1063
  %v1067 = vtanh.pop %v1064
  %v1068 = vmul.f32 %v1065, 0.5
  %v1069 = vmul.f32 %v1066, 0.5
  %v1070 = vmul.f32 %v1067, 0.5
  %v1071 = vadd.f32 %v1068, 0.5
  %v1072 = vadd.f32 %v1069, 0.5
  %v1073 = vadd.f32 %v1070, 0.5
  %v1074 = vtanh.pop %v1061
  %v1075 = vmul.f32 %v1072, %v963
  %v1076 = vmul.f32 %v1071, %v1074
  %v1077 = vadd.f32 %v1075, %v1076
  %v1078 = vtanh.pop %v1077
  %v1079 = vmul.f32 %v1073, %v1078
  %s1080 = scalar_lea.vmem %s8, 16
  %1081 = vst [vmem:[%s1080] sm:$0xff] %v1079
  %s1082 = smul.u32 3, 4
  %s1083 = smul.addr %s1082, 8
  %s1084 = scalar_lea.vmem [#allocation4], %s1083
  %v1085 = vld [vmem:[%s1084] sm:$0xff]
  %v1086 = vld [vmem:[%s1084 + $0x8] sm:$0xff]
  %v1087 = vld [vmem:[%s1084 + $0x10] sm:$0xff]
  %v1088 = vld [vmem:[%s1084 + $0x18] sm:$0xff]
  %v1089 = vpack.c.bf16 %v1079, %v1079
  %1090 = vmatprep.subr.bf16.mxu0 %v686
  %1091 = vmatpush1.bf16.msra.mxu0 %v685
  %1092 = vmatprep.subr.bf16.mxu0 %v690
  %1093 = vmatpush1.bf16.msra.mxu0 %v689
  %1094 = vmatprep.subr.bf16.mxu0 %v694
  %1095 = vmatpush1.bf16.msra.mxu0 %v693
  %1096 = vmatprep.subr.bf16.mxu0 %v698
  %1097 = vmatpush1.bf16.msra.mxu0 %v697
  %1098 = vmatprep.subr.bf16.mxu0 %v702
  %1099 = vmatpush1.bf16.msra.mxu0 %v701
  %1100 = vmatprep.subr.bf16.mxu0 %v706
  %1101 = vmatpush1.bf16.msra.mxu0 %v705
  %1102 = vmatprep.subr.bf16.mxu0 %v710
  %1103 = vmatpush1.bf16.msra.mxu0 %v709
  %1104 = vmatprep.subr.bf16.mxu0 %v714
  %1105 = vmatpush1.bf16.msra.mxu0 %v713
  %1106 = vmatprep.subr.bf16.mxu0 0
  %1107 = vmatpush1.bf16.msra.mxu0 0
  %1108 = vmatprep.subr.bf16.mxu0 0
  %1109 = vmatpush1.bf16.msra.mxu0 0
  %1110 = vmatprep.subr.bf16.mxu0 0
  %1111 = vmatpush1.bf16.msra.mxu0 0
  %1112 = vmatprep.subr.bf16.mxu0 0
  %1113 = vmatpush1.bf16.msra.mxu0 0
  %1114 = vmatprep.subr.bf16.mxu0 0
  %1115 = vmatpush1.bf16.msra.mxu0 0
  %1116 = vmatprep.subr.bf16.mxu0 0
  %1117 = vmatpush1.bf16.msra.mxu0 0
  %1118 = vmatprep.subr.bf16.mxu0 0
  %1119 = vmatpush1.bf16.msra.mxu0 0
  %1120 = vmatprep.subr.bf16.mxu0 0
  %1121 = vmatpush1.bf16.msra.mxu0 0
  %1122 = vmatprep.mubr.bf16.mxu0 0
  %1123 = vmatmul.mubr.bf16.gmra.mrb[0].mxu0 %v1089
  %v1124 = vpop.f32.mrb[0].mxu0
  %v1125 = vadd.f32 0.0, %v1124
  %v1126 = vpop.f32.mrb[0].mxu0
  %v1127 = vadd.f32 0.0, %v1126
  %v1128 = vpop.f32.mrb[0].mxu0
  %v1129 = vpop.f32.mrb[0].mxu0
  %1130 = vdwg.mxu0
  %1131 = vmatprep.subr.bf16.mxu0 %v688
  %1132 = vmatpush1.bf16.msra.mxu0 %v687
  %1133 = vmatprep.subr.bf16.mxu0 %v692
  %1134 = vmatpush1.bf16.msra.mxu0 %v691
  %1135 = vmatprep.subr.bf16.mxu0 %v696
  %1136 = vmatpush1.bf16.msra.mxu0 %v695
  %1137 = vmatprep.subr.bf16.mxu0 %v700
  %1138 = vmatpush1.bf16.msra.mxu0 %v699
  %1139 = vmatprep.subr.bf16.mxu0 %v704
  %1140 = vmatpush1.bf16.msra.mxu0 %v703
  %1141 = vmatprep.subr.bf16.mxu0 %v708
  %1142 = vmatpush1.bf16.msra.mxu0 %v707
  %1143 = vmatprep.subr.bf16.mxu0 %v712
  %1144 = vmatpush1.bf16.msra.mxu0 %v711
  %1145 = vmatprep.subr.bf16.mxu0 %v716
  %1146 = vmatpush1.bf16.msra.mxu0 %v715
  %1147 = vmatprep.subr.bf16.mxu0 0
  %1148 = vmatpush1.bf16.msra.mxu0 0
  %1149 = vmatprep.subr.bf16.mxu0 0
  %1150 = vmatpush1.bf16.msra.mxu0 0
  %1151 = vmatprep.subr.bf16.mxu0 0
  %1152 = vmatpush1.bf16.msra.mxu0 0
  %1153 = vmatprep.subr.bf16.mxu0 0
  %1154 = vmatpush1.bf16.msra.mxu0 0
  %1155 = vmatprep.subr.bf16.mxu0 0
  %1156 = vmatpush1.bf16.msra.mxu0 0
  %1157 = vmatprep.subr.bf16.mxu0 0
  %1158 = vmatpush1.bf16.msra.mxu0 0
  %1159 = vmatprep.subr.bf16.mxu0 0
  %1160 = vmatpush1.bf16.msra.mxu0 0
  %1161 = vmatprep.subr.bf16.mxu0 0
  %1162 = vmatpush1.bf16.msra.mxu0 0
  %1163 = vmatprep.mubr.bf16.mxu0 0
  %1164 = vmatmul.mubr.bf16.gmra.mrb[0].mxu0 %v1089
  %v1165 = vpop.f32.mrb[0].mxu0
  %v1166 = vadd.f32 0.0, %v1165
  %v1167 = vpop.f32.mrb[0].mxu0
  %v1168 = vadd.f32 0.0, %v1167
  %v1169 = vpop.f32.mrb[0].mxu0
  %v1170 = vpop.f32.mrb[0].mxu0
  %1171 = vdwg.mxu0
  %v1172 = vadd.f32 %v1085, %v1125
  %v1173 = vadd.f32 %v1086, %v1127
  %v1174 = vadd.f32 %v1087, %v1166
  %v1175 = vadd.f32 %v1088, %v1168
  %v1176 = vmul.f32 %v1172, 0.5
  %v1177 = vmul.f32 %v1173, 0.5
  %v1178 = vmul.f32 %v1174, 0.5
  %v1179 = vtanh.pop %v1176
  %v1180 = vtanh.pop %v1177
  %v1181 = vtanh.pop %v1178
  %v1182 = vmul.f32 %v1179, 0.5
  %v1183 = vmul.f32 %v1180, 0.5
  %v1184 = vmul.f32 %v1181, 0.5
  %v1185 = vadd.f32 %v1182, 0.5
  %v1186 = vadd.f32 %v1183, 0.5
  %v1187 = vadd.f32 %v1184, 0.5
  %v1188 = vtanh.pop %v1175
  %v1189 = vmul.f32 %v1186, %v1077
  %v1190 = vmul.f32 %v1185, %v1188
  %v1191 = vadd.f32 %v1189, %v1190
  %v1192 = vtanh.pop %v1191
  %v1193 = vmul.f32 %v1187, %v1192
  %s1194 = scalar_lea.vmem %s8, 24
  %1195 = vst [vmem:[%s1194] sm:$0xff] %v1193
  %s1196 = smul.u32 4, 4
  %s1197 = smul.addr %s1196, 8
  %s1198 = scalar_lea.vmem [#allocation4], %s1197
  %v1199 = vld [vmem:[%s1198] sm:$0xff]
  %v1200 = vld [vmem:[%s1198 + $0x8] sm:$0xff]
  %v1201 = vld [vmem:[%s1198 + $0x10] sm:$0xff]
  %v1202 = vld [vmem:[%s1198 + $0x18] sm:$0xff]
  %v1203 = vpack.c.bf16 %v1193, %v1193
  %1204 = vmatprep.subr.bf16.mxu0 %v686
  %1205 = vmatpush1.bf16.msra.mxu0 %v685
  %1206 = vmatprep.subr.bf16.mxu0 %v690
  %1207 = vmatpush1.bf16.msra.mxu0 %v689
  %1208 = vmatprep.subr.bf16.mxu0 %v694
  %1209 = vmatpush1.bf16.msra.mxu0 %v693
  %1210 = vmatprep.subr.bf16.mxu0 %v698
  %1211 = vmatpush1.bf16.msra.mxu0 %v697
  %1212 = vmatprep.subr.bf16.mxu0 %v702
  %1213 = vmatpush1.bf16.msra.mxu0 %v701
  %1214 = vmatprep.subr.bf16.mxu0 %v706
  %1215 = vmatpush1.bf16.msra.mxu0 %v705
  %1216 = vmatprep.subr.bf16.mxu0 %v710
  %1217 = vmatpush1.bf16.msra.mxu0 %v709
  %1218 = vmatprep.subr.bf16.mxu0 %v714
  %1219 = vmatpush1.bf16.msra.mxu0 %v713
  %1220 = vmatprep.subr.bf16.mxu0 0
  %1221 = vmatpush1.bf16.msra.mxu0 0
  %1222 = vmatprep.subr.bf16.mxu0 0
  %1223 = vmatpush1.bf16.msra.mxu0 0
  %1224 = vmatprep.subr.bf16.mxu0 0
  %1225 = vmatpush1.bf16.msra.mxu0 0
  %1226 = vmatprep.subr.bf16.mxu0 0
  %1227 = vmatpush1.bf16.msra.mxu0 0
  %1228 = vmatprep.subr.bf16.mxu0 0
  %1229 = vmatpush1.bf16.msra.mxu0 0
  %1230 = vmatprep.subr.bf16.mxu0 0
  %1231 = vmatpush1.bf16.msra.mxu0 0
  %1232 = vmatprep.subr.bf16.mxu0 0
  %1233 = vmatpush1.bf16.msra.mxu0 0
  %1234 = vmatprep.subr.bf16.mxu0 0
  %1235 = vmatpush1.bf16.msra.mxu0 0
  %1236 = vmatprep.mubr.bf16.mxu0 0
  %1237 = vmatmul.mubr.bf16.gmra.mrb[0].mxu0 %v1203
  %v1238 = vpop.f32.mrb[0].mxu0
  %v1239 = vadd.f32 0.0, %v1238
  %v1240 = vpop.f32.mrb[0].mxu0
  %v1241 = vadd.f32 0.0, %v1240
  %v1242 = vpop.f32.mrb[0].mxu0
  %v1243 = vpop.f32.mrb[0].mxu0
  %1244 = vdwg.mxu0
  %1245 = vmatprep.subr.bf16.mxu0 %v688
  %1246 = vmatpush1.bf16.msra.mxu0 %v687
  %1247 = vmatprep.subr.bf16.mxu0 %v692
  %1248 = vmatpush1.bf16.msra.mxu0 %v691
  %1249 = vmatprep.subr.bf16.mxu0 %v696
  %1250 = vmatpush1.bf16.msra.mxu0 %v695
  %1251 = vmatprep.subr.bf16.mxu0 %v700
  %1252 = vmatpush1.bf16.msra.mxu0 %v699
  %1253 = vmatprep.subr.bf16.mxu0 %v704
  %1254 = vmatpush1.bf16.msra.mxu0 %v703
  %1255 = vmatprep.subr.bf16.mxu0 %v708
  %1256 = vmatpush1.bf16.msra.mxu0 %v707
  %1257 = vmatprep.subr.bf16.mxu0 %v712
  %1258 = vmatpush1.bf16.msra.mxu0 %v711
  %1259 = vmatprep.subr.bf16.mxu0 %v716
  %1260 = vmatpush1.bf16.msra.mxu0 %v715
  %1261 = vmatprep.subr.bf16.mxu0 0
  %1262 = vmatpush1.bf16.msra.mxu0 0
  %1263 = vmatprep.subr.bf16.mxu0 0
  %1264 = vmatpush1.bf16.msra.mxu0 0
  %1265 = vmatprep.subr.bf16.mxu0 0
  %1266 = vmatpush1.bf16.msra.mxu0 0
  %1267 = vmatprep.subr.bf16.mxu0 0
  %1268 = vmatpush1.bf16.msra.mxu0 0
  %1269 = vmatprep.subr.bf16.mxu0 0
  %1270 = vmatpush1.bf16.msra.mxu0 0
  %1271 = vmatprep.subr.bf16.mxu0 0
  %1272 = vmatpush1.bf16.msra.mxu0 0
  %1273 = vmatprep.subr.bf16.mxu0 0
  %1274 = vmatpush1.bf16.msra.mxu0 0
  %1275 = vmatprep.subr.bf16.mxu0 0
  %1276 = vmatpush1.bf16.msra.mxu0 0
  %1277 = vmatprep.mubr.bf16.mxu0 0
  %1278 = vmatmul.mubr.bf16.gmra.mrb[0].mxu0 %v1203
  %v1279 = vpop.f32.mrb[0].mxu0
  %v1280 = vadd.f32 0.0, %v1279
  %v1281 = vpop.f32.mrb[0].mxu0
  %v1282 = vadd.f32 0.0, %v1281
  %v1283 = vpop.f32.mrb[0].mxu0
  %v1284 = vpop.f32.mrb[0].mxu0
  %1285 = vdwg.mxu0
  %v1286 = vadd.f32 %v1199, %v1239
  %v1287 = vadd.f32 %v1200, %v1241
  %v1288 = vadd.f32 %v1201, %v1280
  %v1289 = vadd.f32 %v1202, %v1282
  %v1290 = vmul.f32 %v1286, 0.5
  %v1291 = vmul.f32 %v1287, 0.5
  %v1292 = vmul.f32 %v1288, 0.5
  %v1293 = vtanh.pop %v1290
  %v1294 = vtanh.pop %v1291
  %v1295 = vtanh.pop %v1292
  %v1296 = vmul.f32 %v1293, 0.5
  %v1297 = vmul.f32 %v1294, 0.5
  %v1298 = vmul.f32 %v1295, 0.5
  %v1299 = vadd.f32 %v1296, 0.5
  %v1300 = vadd.f32 %v1297, 0.5
  %v1301 = vadd.f32 %v1298, 0.5
  %v1302 = vtanh.pop %v1289
  %v1303 = vmul.f32 %v1300, %v1191
  %v1304 = vmul.f32 %v1299, %v1302
  %v1305 = vadd.f32 %v1303, %v1304
  %v1306 = vtanh.pop %v1305
  %v1307 = vmul.f32 %v1301, %v1306
  %s1308 = scalar_lea.vmem %s8, 32
  %1309 = vst [vmem:[%s1308] sm:$0xff] %v1307
  %s1310 = smul.u32 5, 4
  %s1311 = smul.addr %s1310, 8
  %s1312 = scalar_lea.vmem [#allocation4], %s1311
  %v1313 = vld [vmem:[%s1312] sm:$0xff]
  %v1314 = vld [vmem:[%s1312 + $0x8] sm:$0xff]
  %v1315 = vld [vmem:[%s1312 + $0x10] sm:$0xff]
  %v1316 = vld [vmem:[%s1312 + $0x18] sm:$0xff]
  %v1317 = vpack.c.bf16 %v1307, %v1307
  %1318 = vmatprep.subr.bf16.mxu0 %v686
  %1319 = vmatpush1.bf16.msra.mxu0 %v685
  %1320 = vmatprep.subr.bf16.mxu0 %v690
  %1321 = vmatpush1.bf16.msra.mxu0 %v689
  %1322 = vmatprep.subr.bf16.mxu0 %v694
  %1323 = vmatpush1.bf16.msra.mxu0 %v693
  %1324 = vmatprep.subr.bf16.mxu0 %v698
  %1325 = vmatpush1.bf16.msra.mxu0 %v697
  %1326 = vmatprep.subr.bf16.mxu0 %v702
  %1327 = vmatpush1.bf16.msra.mxu0 %v701
  %1328 = vmatprep.subr.bf16.mxu0 %v706
  %1329 = vmatpush1.bf16.msra.mxu0 %v705
  %1330 = vmatprep.subr.bf16.mxu0 %v710
  %1331 = vmatpush1.bf16.msra.mxu0 %v709
  %1332 = vmatprep.subr.bf16.mxu0 %v714
  %1333 = vmatpush1.bf16.msra.mxu0 %v713
  %1334 = vmatprep.subr.bf16.mxu0 0
  %1335 = vmatpush1.bf16.msra.mxu0 0
  %1336 = vmatprep.subr.bf16.mxu0 0
  %1337 = vmatpush1.bf16.msra.mxu0 0
  %1338 = vmatprep.subr.bf16.mxu0 0
  %1339 = vmatpush1.bf16.msra.mxu0 0
  %1340 = vmatprep.subr.bf16.mxu0 0
  %1341 = vmatpush1.bf16.msra.mxu0 0
  %1342 = vmatprep.subr.bf16.mxu0 0
  %1343 = vmatpush1.bf16.msra.mxu0 0
  %1344 = vmatprep.subr.bf16.mxu0 0
  %1345 = vmatpush1.bf16.msra.mxu0 0
  %1346 = vmatprep.subr.bf16.mxu0 0
  %1347 = vmatpush1.bf16.msra.mxu0 0
  %1348 = vmatprep.subr.bf16.mxu0 0
  %1349 = vmatpush1.bf16.msra.mxu0 0
  %1350 = vmatprep.mubr.bf16.mxu0 0
  %1351 = vmatmul.mubr.bf16.gmra.mrb[0].mxu0 %v1317
  %v1352 = vpop.f32.mrb[0].mxu0
  %v1353 = vadd.f32 0.0, %v1352
  %v1354 = vpop.f32.mrb[0].mxu0
  %v1355 = vadd.f32 0.0, %v1354
  %v1356 = vpop.f32.mrb[0].mxu0
  %v1357 = vpop.f32.mrb[0].mxu0
  %1358 = vdwg.mxu0
  %1359 = vmatprep.subr.bf16.mxu0 %v688
  %1360 = vmatpush1.bf16.msra.mxu0 %v687
  %1361 = vmatprep.subr.bf16.mxu0 %v692
  %1362 = vmatpush1.bf16.msra.mxu0 %v691
  %1363 = vmatprep.subr.bf16.mxu0 %v696
  %1364 = vmatpush1.bf16.msra.mxu0 %v695
  %1365 = vmatprep.subr.bf16.mxu0 %v700
  %1366 = vmatpush1.bf16.msra.mxu0 %v699
  %1367 = vmatprep.subr.bf16.mxu0 %v704
  %1368 = vmatpush1.bf16.msra.mxu0 %v703
  %1369 = vmatprep.subr.bf16.mxu0 %v708
  %1370 = vmatpush1.bf16.msra.mxu0 %v707
  %1371 = vmatprep.subr.bf16.mxu0 %v712
  %1372 = vmatpush1.bf16.msra.mxu0 %v711
  %1373 = vmatprep.subr.bf16.mxu0 %v716
  %1374 = vmatpush1.bf16.msra.mxu0 %v715
  %1375 = vmatprep.subr.bf16.mxu0 0
  %1376 = vmatpush1.bf16.msra.mxu0 0
  %1377 = vmatprep.subr.bf16.mxu0 0
  %1378 = vmatpush1.bf16.msra.mxu0 0
  %1379 = vmatprep.subr.bf16.mxu0 0
  %1380 = vmatpush1.bf16.msra.mxu0 0
  %1381 = vmatprep.subr.bf16.mxu0 0
  %1382 = vmatpush1.bf16.msra.mxu0 0
  %1383 = vmatprep.subr.bf16.mxu0 0
  %1384 = vmatpush1.bf16.msra.mxu0 0
  %1385 = vmatprep.subr.bf16.mxu0 0
  %1386 = vmatpush1.bf16.msra.mxu0 0
  %1387 = vmatprep.subr.bf16.mxu0 0
  %1388 = vmatpush1.bf16.msra.mxu0 0
  %1389 = vmatprep.subr.bf16.mxu0 0
  %1390 = vmatpush1.bf16.msra.mxu0 0
  %1391 = vmatprep.mubr.bf16.mxu0 0
  %1392 = vmatmul.mubr.bf16.gmra.mrb[0].mxu0 %v1317
  %v1393 = vpop.f32.mrb[0].mxu0
  %v1394 = vadd.f32 0.0, %v1393
  %v1395 = vpop.f32.mrb[0].mxu0
  %v1396 = vadd.f32 0.0, %v1395
  %v1397 = vpop.f32.mrb[0].mxu0
  %v1398 = vpop.f32.mrb[0].mxu0
  %1399 = vdwg.mxu0
  %v1400 = vadd.f32 %v1313, %v1353
  %v1401 = vadd.f32 %v1314, %v1355
  %v1402 = vadd.f32 %v1315, %v1394
  %v1403 = vadd.f32 %v1316, %v1396
  %v1404 = vmul.f32 %v1400, 0.5
  %v1405 = vmul.f32 %v1401, 0.5
  %v1406 = vmul.f32 %v1402, 0.5
  %v1407 = vtanh.pop %v1404
  %v1408 = vtanh.pop %v1405
  %v1409 = vtanh.pop %v1406
  %v1410 = vmul.f32 %v1407, 0.5
  %v1411 = vmul.f32 %v1408, 0.5
  %v1412 = vmul.f32 %v1409, 0.5
  %v1413 = vadd.f32 %v1410, 0.5
  %v1414 = vadd.f32 %v1411, 0.5
  %v1415 = vadd.f32 %v1412, 0.5
  %v1416 = vtanh.pop %v1403
  %v1417 = vmul.f32 %v1414, %v1305
  %v1418 = vmul.f32 %v1413, %v1416
  %v1419 = vadd.f32 %v1417, %v1418
  %v1420 = vtanh.pop %v1419
  %v1421 = vmul.f32 %v1415, %v1420
  %s1422 = scalar_lea.vmem %s8, 40
  %1423 = vst [vmem:[%s1422] sm:$0xff] %v1421
  %s1424 = smul.u32 6, 4
  %s1425 = smul.addr %s1424, 8
  %s1426 = scalar_lea.vmem [#allocation4], %s1425
  %v1427 = vld [vmem:[%s1426] sm:$0xff]
  %v1428 = vld [vmem:[%s1426 + $0x8] sm:$0xff]
  %v1429 = vld [vmem:[%s1426 + $0x10] sm:$0xff]
  %v1430 = vld [vmem:[%s1426 + $0x18] sm:$0xff]
  %v1431 = vpack.c.bf16 %v1421, %v1421
  %1432 = vmatprep.subr.bf16.mxu0 %v686
  %1433 = vmatpush1.bf16.msra.mxu0 %v685
  %1434 = vmatprep.subr.bf16.mxu0 %v690
  %1435 = vmatpush1.bf16.msra.mxu0 %v689
  %1436 = vmatprep.subr.bf16.mxu0 %v694
  %1437 = vmatpush1.bf16.msra.mxu0 %v693
  %1438 = vmatprep.subr.bf16.mxu0 %v698
  %1439 = vmatpush1.bf16.msra.mxu0 %v697
  %1440 = vmatprep.subr.bf16.mxu0 %v702
  %1441 = vmatpush1.bf16.msra.mxu0 %v701
  %1442 = vmatprep.subr.bf16.mxu0 %v706
  %1443 = vmatpush1.bf16.msra.mxu0 %v705
  %1444 = vmatprep.subr.bf16.mxu0 %v710
  %1445 = vmatpush1.bf16.msra.mxu0 %v709
  %1446 = vmatprep.subr.bf16.mxu0 %v714
  %1447 = vmatpush1.bf16.msra.mxu0 %v713
  %1448 = vmatprep.subr.bf16.mxu0 0
  %1449 = vmatpush1.bf16.msra.mxu0 0
  %1450 = vmatprep.subr.bf16.mxu0 0
  %1451 = vmatpush1.bf16.msra.mxu0 0
  %1452 = vmatprep.subr.bf16.mxu0 0
  %1453 = vmatpush1.bf16.msra.mxu0 0
  %1454 = vmatprep.subr.bf16.mxu0 0
  %1455 = vmatpush1.bf16.msra.mxu0 0
  %1456 = vmatprep.subr.bf16.mxu0 0
  %1457 = vmatpush1.bf16.msra.mxu0 0
  %1458 = vmatprep.subr.bf16.mxu0 0
  %1459 = vmatpush1.bf16.msra.mxu0 0
  %1460 = vmatprep.subr.bf16.mxu0 0
  %1461 = vmatpush1.bf16.msra.mxu0 0
  %1462 = vmatprep.subr.bf16.mxu0 0
  %1463 = vmatpush1.bf16.msra.mxu0 0
  %1464 = vmatprep.mubr.bf16.mxu0 0
  %1465 = vmatmul.mubr.bf16.gmra.mrb[0].mxu0 %v1431
  %v1466 = vpop.f32.mrb[0].mxu0
  %v1467 = vadd.f32 0.0, %v1466
  %v1468 = vpop.f32.mrb[0].mxu0
  %v1469 = vadd.f32 0.0, %v1468
  %v1470 = vpop.f32.mrb[0].mxu0
  %v1471 = vpop.f32.mrb[0].mxu0
  %1472 = vdwg.mxu0
  %1473 = vmatprep.subr.bf16.mxu0 %v688
  %1474 = vmatpush1.bf16.msra.mxu0 %v687
  %1475 = vmatprep.subr.bf16.mxu0 %v692
  %1476 = vmatpush1.bf16.msra.mxu0 %v691
  %1477 = vmatprep.subr.bf16.mxu0 %v696
  %1478 = vmatpush1.bf16.msra.mxu0 %v695
  %1479 = vmatprep.subr.bf16.mxu0 %v700
  %1480 = vmatpush1.bf16.msra.mxu0 %v699
  %1481 = vmatprep.subr.bf16.mxu0 %v704
  %1482 = vmatpush1.bf16.msra.mxu0 %v703
  %1483 = vmatprep.subr.bf16.mxu0 %v708
  %1484 = vmatpush1.bf16.msra.mxu0 %v707
  %1485 = vmatprep.subr.bf16.mxu0 %v712
  %1486 = vmatpush1.bf16.msra.mxu0 %v711
  %1487 = vmatprep.subr.bf16.mxu0 %v716
  %1488 = vmatpush1.bf16.msra.mxu0 %v715
  %1489 = vmatprep.subr.bf16.mxu0 0
  %1490 = vmatpush1.bf16.msra.mxu0 0
  %1491 = vmatprep.subr.bf16.mxu0 0
  %1492 = vmatpush1.bf16.msra.mxu0 0
  %1493 = vmatprep.subr.bf16.mxu0 0
  %1494 = vmatpush1.bf16.msra.mxu0 0
  %1495 = vmatprep.subr.bf16.mxu0 0
  %1496 = vmatpush1.bf16.msra.mxu0 0
  %1497 = vmatprep.subr.bf16.mxu0 0
  %1498 = vmatpush1.bf16.msra.mxu0 0
  %1499 = vmatprep.subr.bf16.mxu0 0
  %1500 = vmatpush1.bf16.msra.mxu0 0
  %1501 = vmatprep.subr.bf16.mxu0 0
  %1502 = vmatpush1.bf16.msra.mxu0 0
  %1503 = vmatprep.subr.bf16.mxu0 0
  %1504 = vmatpush1.bf16.msra.mxu0 0
  %1505 = vmatprep.mubr.bf16.mxu0 0
  %1506 = vmatmul.mubr.bf16.gmra.mrb[0].mxu0 %v1431
  %v1507 = vpop.f32.mrb[0].mxu0
  %v1508 = vadd.f32 0.0, %v1507
  %v1509 = vpop.f32.mrb[0].mxu0
  %v1510 = vadd.f32 0.0, %v1509
  %v1511 = vpop.f32.mrb[0].mxu0
  %v1512 = vpop.f32.mrb[0].mxu0
  %1513 = vdwg.mxu0
  %v1514 = vadd.f32 %v1427, %v1467
  %v1515 = vadd.f32 %v1428, %v1469
  %v1516 = vadd.f32 %v1429, %v1508
  %v1517 = vadd.f32 %v1430, %v1510
  %v1518 = vmul.f32 %v1514, 0.5
  %v1519 = vmul.f32 %v1515, 0.5
  %v1520 = vmul.f32 %v1516, 0.5
  %v1521 = vtanh.pop %v1518
  %v1522 = vtanh.pop %v1519
  %v1523 = vtanh.pop %v1520
  %v1524 = vmul.f32 %v1521, 0.5
  %v1525 = vmul.f32 %v1522, 0.5
  %v1526 = vmul.f32 %v1523, 0.5
  %v1527 = vadd.f32 %v1524, 0.5
  %v1528 = vadd.f32 %v1525, 0.5
  %v1529 = vadd.f32 %v1526, 0.5
  %v1530 = vtanh.pop %v1517
  %v1531 = vmul.f32 %v1528, %v1419
  %v1532 = vmul.f32 %v1527, %v1530
  %v1533 = vadd.f32 %v1531, %v1532
  %v1534 = vtanh.pop %v1533
  %v1535 = vmul.f32 %v1529, %v1534
  %s1536 = scalar_lea.vmem %s8, 48
  %1537 = vst [vmem:[%s1536] sm:$0xff] %v1535
  %s1538 = smul.u32 7, 4
  %s1539 = smul.addr %s1538, 8
  %s1540 = scalar_lea.vmem [#allocation4], %s1539
  %v1541 = vld [vmem:[%s1540] sm:$0xff]
  %v1542 = vld [vmem:[%s1540 + $0x8] sm:$0xff]
  %v1543 = vld [vmem:[%s1540 + $0x10] sm:$0xff]
  %v1544 = vld [vmem:[%s1540 + $0x18] sm:$0xff]
  %v1545 = vpack.c.bf16 %v1535, %v1535
  %1546 = vmatprep.subr.bf16.mxu0 %v686
  %1547 = vmatpush1.bf16.msra.mxu0 %v685
  %1548 = vmatprep.subr.bf16.mxu0 %v690
  %1549 = vmatpush1.bf16.msra.mxu0 %v689
  %1550 = vmatprep.subr.bf16.mxu0 %v694
  %1551 = vmatpush1.bf16.msra.mxu0 %v693
  %1552 = vmatprep.subr.bf16.mxu0 %v698
  %1553 = vmatpush1.bf16.msra.mxu0 %v697
  %1554 = vmatprep.subr.bf16.mxu0 %v702
  %1555 = vmatpush1.bf16.msra.mxu0 %v701
  %1556 = vmatprep.subr.bf16.mxu0 %v706
  %1557 = vmatpush1.bf16.msra.mxu0 %v705
  %1558 = vmatprep.subr.bf16.mxu0 %v710
  %1559 = vmatpush1.bf16.msra.mxu0 %v709
  %1560 = vmatprep.subr.bf16.mxu0 %v714
  %1561 = vmatpush1.bf16.msra.mxu0 %v713
  %1562 = vmatprep.subr.bf16.mxu0 0
  %1563 = vmatpush1.bf16.msra.mxu0 0
  %1564 = vmatprep.subr.bf16.mxu0 0
  %1565 = vmatpush1.bf16.msra.mxu0 0
  %1566 = vmatprep.subr.bf16.mxu0 0
  %1567 = vmatpush1.bf16.msra.mxu0 0
  %1568 = vmatprep.subr.bf16.mxu0 0
  %1569 = vmatpush1.bf16.msra.mxu0 0
  %1570 = vmatprep.subr.bf16.mxu0 0
  %1571 = vmatpush1.bf16.msra.mxu0 0
  %1572 = vmatprep.subr.bf16.mxu0 0
  %1573 = vmatpush1.bf16.msra.mxu0 0
  %1574 = vmatprep.subr.bf16.mxu0 0
  %1575 = vmatpush1.bf16.msra.mxu0 0
  %1576 = vmatprep.subr.bf16.mxu0 0
  %1577 = vmatpush1.bf16.msra.mxu0 0
  %1578 = vmatprep.mubr.bf16.mxu0 0
  %1579 = vmatmul.mubr.bf16.gmra.mrb[0].mxu0 %v1545
  %v1580 = vpop.f32.mrb[0].mxu0
  %v1581 = vadd.f32 0.0, %v1580
  %v1582 = vpop.f32.mrb[0].mxu0
  %v1583 = vadd.f32 0.0, %v1582
  %v1584 = vpop.f32.mrb[0].mxu0
  %v1585 = vpop.f32.mrb[0].mxu0
  %1586 = vdwg.mxu0
  %1587 = vmatprep.subr.bf16.mxu0 %v688
  %1588 = vmatpush1.bf16.msra.mxu0 %v687
  %1589 = vmatprep.subr.bf16.mxu0 %v692
  %1590 = vmatpush1.bf16.msra.mxu0 %v691
  %1591 = vmatprep.subr.bf16.mxu0 %v696
  %1592 = vmatpush1.bf16.msra.mxu0 %v695
  %1593 = vmatprep.subr.bf16.mxu0 %v700
  %1594 = vmatpush1.bf16.msra.mxu0 %v699
  %1595 = vmatprep.subr.bf16.mxu0 %v704
  %1596 = vmatpush1.bf16.msra.mxu0 %v703
  %1597 = vmatprep.subr.bf16.mxu0 %v708
  %1598 = vmatpush1.bf16.msra.mxu0 %v707
  %1599 = vmatprep.subr.bf16.mxu0 %v712
  %1600 = vmatpush1.bf16.msra.mxu0 %v711
  %1601 = vmatprep.subr.bf16.mxu0 %v716
  %1602 = vmatpush1.bf16.msra.mxu0 %v715
  %1603 = vmatprep.subr.bf16.mxu0 0
  %1604 = vmatpush1.bf16.msra.mxu0 0
  %1605 = vmatprep.subr.bf16.mxu0 0
  %1606 = vmatpush1.bf16.msra.mxu0 0
  %1607 = vmatprep.subr.bf16.mxu0 0
  %1608 = vmatpush1.bf16.msra.mxu0 0
  %1609 = vmatprep.subr.bf16.mxu0 0
  %1610 = vmatpush1.bf16.msra.mxu0 0
  %1611 = vmatprep.subr.bf16.mxu0 0
  %1612 = vmatpush1.bf16.msra.mxu0 0
  %1613 = vmatprep.subr.bf16.mxu0 0
  %1614 = vmatpush1.bf16.msra.mxu0 0
  %1615 = vmatprep.subr.bf16.mxu0 0
  %1616 = vmatpush1.bf16.msra.mxu0 0
  %1617 = vmatprep.subr.bf16.mxu0 0
  %1618 = vmatpush1.bf16.msra.mxu0 0
  %1619 = vmatprep.mubr.bf16.mxu0 0
  %1620 = vmatmul.mubr.bf16.gmra.mrb[0].mxu0 %v1545
  %v1621 = vpop.f32.mrb[0].mxu0
  %v1622 = vadd.f32 0.0, %v1621
  %v1623 = vpop.f32.mrb[0].mxu0
  %v1624 = vadd.f32 0.0, %v1623
  %v1625 = vpop.f32.mrb[0].mxu0
  %v1626 = vpop.f32.mrb[0].mxu0
  %1627 = vdwg.mxu0
  %v1628 = vadd.f32 %v1541, %v1581
  %v1629 = vadd.f32 %v1542, %v1583
  %v1630 = vadd.f32 %v1543, %v1622
  %v1631 = vadd.f32 %v1544, %v1624
  %v1632 = vmul.f32 %v1628, 0.5
  %v1633 = vmul.f32 %v1629, 0.5
  %v1634 = vmul.f32 %v1630, 0.5
  %v1635 = vtanh.pop %v1632
  %v1636 = vtanh.pop %v1633
  %v1637 = vtanh.pop %v1634
  %v1638 = vmul.f32 %v1635, 0.5
  %v1639 = vmul.f32 %v1636, 0.5
  %v1640 = vmul.f32 %v1637, 0.5
  %v1641 = vadd.f32 %v1638, 0.5
  %v1642 = vadd.f32 %v1639, 0.5
  %v1643 = vadd.f32 %v1640, 0.5
  %v1644 = vtanh.pop %v1631
  %v1645 = vmul.f32 %v1642, %v1533
  %v1646 = vmul.f32 %v1641, %v1644
  %v1647 = vadd.f32 %v1645, %v1646
  %v1648 = vtanh.pop %v1647
  %v1649 = vmul.f32 %v1643, %v1648
  %s1650 = scalar_lea.vmem %s8, 56
  %1651 = vst [vmem:[%s1650] sm:$0xff] %v1649
  %1652 = vst [vmem:[#allocation2] sm:$0xff] %v1649
  %1653 = vst [vmem:[#allocation3] sm:$0xff] %v1647
  %1654 = vst [vmem:[%s9] sm:$0xff] %v1649
  %1655 = vst [vmem:[%s10] sm:$0xff] %v1647
  // Predicated region
  $region38: #{actor_forward.2} parent=0 // pred_check
    _
  $region39: #{actor_forward.2} parent=0 // pred_check_branch
    %1657 = sbr.rel (0) target = $region41
  $region40: #{actor_forward.2} parent=0 // pred_region
    _
  $region41: #{actor_forward.2} parent=0 // pred_fallthru
    _
  // Predicated region
  $region42: #{actor_forward.2} parent=0 // pred_check
    _
  $region43: #{actor_forward.2} parent=0 // pred_check_branch
    %1659 = sbr.rel (0) target = $region45
  $region44: #{actor_forward.2} parent=0 // pred_region
    _
  $region45: #{actor_forward.2} parent=0 // pred_fallthru
    _
  // Predicated region
  $region46: #{actor_forward.2} parent=0 // pred_check
    _
  $region47: #{actor_forward.2} parent=0 // pred_check_branch
    %1661 = sbr.rel (0) target = $region49
  $region48: #{actor_forward.2} parent=0 // pred_region
    _
  $region49: #{actor_forward.2} parent=0 // pred_fallthru
    _
  // Predicated region
  $region50: #{actor_forward.2} parent=0 // pred_check
    _
  $region51: #{actor_forward.2} parent=0 // pred_check_branch
    %1663 = sbr.rel (0) target = $region53
  $region52: #{actor_forward.2} parent=0 // pred_region
    _
  $region53: #{actor_forward.2} parent=0 // pred_fallthru
    _
  // Predicated region
  $region54: #{actor_forward.2} parent=0 // pred_check
    _
  $region55: #{actor_forward.2} parent=0 // pred_check_branch
    %1665 = sbr.rel (0) target = $region57
  $region56: #{actor_forward.2} parent=0 // pred_region
    _
  $region57: #{actor_forward.2} parent=0 // pred_fallthru
    _
  // Predicated region
  $region58: #{actor_forward.2} parent=0 // pred_check
    _
  $region59: #{actor_forward.2} parent=0 // pred_check_branch
    %1667 = sbr.rel (0) target = $region61
  $region60: #{actor_forward.2} parent=0 // pred_region
    _
  $region61: #{actor_forward.2} parent=0 // pred_fallthru
    _

</llo_original>
